<compile_context>
chip_gen: v6e
topology: v6e:2x2x1
jax: 0.10.0
libtpu: 0.0.40
codegen_flags: <defaults>
</compile_context>

<pallas_src>
import numpy as np
import jax
import jax.numpy as jnp
from jax.experimental import pallas as pl
from jax.experimental.pallas import tpu as pltpu


# Reference normalization constants (preprocessing from the reference script).
X_MEAN = np.array([13.954896, 9.5851928, 11.948139, 15.474422, 15.717001,
                   15.650609, -14.815044, -2.3404391, -7.1923663, -57.846782,
                   -182.95906], dtype=np.float32)
X_STD = np.array([0.324855981, 0.478972654, 0.830422947, 0.237172289,
                  0.200656458, 0.33501573, 0.368295868, 0.226876614,
                  0.219417668, 272.298625, 330.543704], dtype=np.float32)

# Layer sizes of the MLP.
LAYER_DIMS = [11, 32, 64, 128, 256, 128, 64, 32, 1]
NUM_LAYERS = len(LAYER_DIMS) - 1   # 8 Linear layers
NUM_FEATURES = LAYER_DIMS[0]       # 11
IN_PAD = 16                        # first-layer K padded 11 -> 16
TILE_B = 128                       # batch tile: fills MXU rows; widest f32
                                   # intermediate (128,256) is 128 KiB


def moganet_kernel(x_ref, mean_ref, inv_std_ref, *refs):
    """refs = (w0, b0, ..., w6, b6, w7_row, b7, out_ref).

    Whole MLP hot path (7 MXU matmuls + bias/ReLU + final VPU reduction) runs
    on-chip for one (TILE_B, IN_PAD) activation tile.
    """
    out_ref = refs[-1]
    p = refs[:-1]

    # Fused input normalization.
    h = (x_ref[...] - mean_ref[...]) * inv_std_ref[...]          # (TB, 16) f32

    # Hidden layers: bf16 operands into the MXU, f32 accumulation,
    # bias + ReLU in f32 on the VPU.
    for layer in range(NUM_LAYERS - 1):
        w = p[2 * layer][...]                                    # bf16 (in, out)
        b = p[2 * layer + 1][...]                                # f32  (1, out)
        h = jnp.dot(h.astype(jnp.bfloat16), w,
                    preferred_element_type=jnp.float32)
        h = jnp.maximum(h + b, 0.0)

    # Final 32 -> 1 layer as VPU multiply + lane reduction (no N=1 matmul).
    w_last = p[-2][...]                                          # f32 (1, 32)
    b_last = p[-1][...]                                          # f32 (1, 1)
    out = jnp.sum(h * w_last, axis=-1, keepdims=True) + b_last   # (TB, 1)
    out_ref[...] = out.astype(out_ref.dtype)


def moganet_forward(raw_x, params):
    """raw_x: (B, 11) float32, *un-normalized*.

    params: list of (W, b) with W stored (in_features, out_features) so the
    kernel computes y = x @ W + b (== PyTorch x @ W.T + b with W transposed).
    """
    B = raw_x.shape[0]
    B_pad = TILE_B * pl.cdiv(B, TILE_B)

    # Pad batch to a tile multiple and features 11 -> IN_PAD.
    x = jnp.zeros((B_pad, IN_PAD), jnp.float32).at[:B, :NUM_FEATURES].set(raw_x)

    # Normalization constants, padded so the extra lanes stay zero.
    mean = jnp.zeros((1, IN_PAD), jnp.float32).at[0, :NUM_FEATURES].set(
        jnp.asarray(X_MEAN))
    inv_std = jnp.ones((1, IN_PAD), jnp.float32).at[0, :NUM_FEATURES].set(
        1.0 / jnp.asarray(X_STD))

    flat_params = []
    in_specs = [
        pl.BlockSpec((TILE_B, IN_PAD), lambda i: (i, 0)),   # x: tiled over batch
        pl.BlockSpec((1, IN_PAD), lambda i: (0, 0)),        # mean (resident)
        pl.BlockSpec((1, IN_PAD), lambda i: (0, 0)),        # 1/std (resident)
    ]
    for layer in range(NUM_LAYERS - 1):
        w, b = params[layer]
        if layer == 0:  # zero-pad K: 11 -> 16 (padded x lanes hit zero rows)
            w = jnp.zeros((IN_PAD, w.shape[1]), w.dtype).at[:NUM_FEATURES].set(w)
        w = w.astype(jnp.bfloat16)                          # MXU-native operands
        b = b.reshape(1, -1).astype(jnp.float32)
        flat_params += [w, b]
        in_specs += [pl.BlockSpec(w.shape, lambda i: (0, 0)),
                     pl.BlockSpec(b.shape, lambda i: (0, 0))]
    w7, b7 = params[-1]
    w7_row = w7.reshape(1, -1).astype(jnp.float32)          # (1, 32) f32 row
    b7 = b7.reshape(1, 1).astype(jnp.float32)
    flat_params += [w7_row, b7]
    in_specs += [pl.BlockSpec(w7_row.shape, lambda i: (0, 0)),
                 pl.BlockSpec(b7.shape, lambda i: (0, 0))]

    # Advisory cost estimate: ~173 KFLOP / row, tiny bytes -> latency/HBM bound.
    flops = 2 * B_pad * sum(LAYER_DIMS[i] * LAYER_DIMS[i + 1]
                            for i in range(NUM_LAYERS))
    param_bytes = sum(int(np.prod(p.shape)) * p.dtype.itemsize
                      for p in flat_params)
    bytes_accessed = B_pad * IN_PAD * 4 + B_pad * 1 * 4 + param_bytes

    out = pl.pallas_call(
        moganet_kernel,
        grid=(B_pad // TILE_B,),
        in_specs=in_specs,
        out_specs=pl.BlockSpec((TILE_B, 1), lambda i: (i, 0)),
        out_shape=jax.ShapeDtypeStruct((B_pad, 1), jnp.float32),
        compiler_params=pltpu.CompilerParams(
            dimension_semantics=("parallel",)),   # megacore sharding on v7x
        cost_estimate=pl.CostEstimate(
            flops=flops, transcendentals=0, bytes_accessed=bytes_accessed),
    )(x, mean, inv_std, *flat_params)
    return out[:B]


def init_params(key):
    """Deterministic synthetic parameters matching the nn.Linear shapes."""
    params = []
    for i in range(NUM_LAYERS):
        fan_in, fan_out = LAYER_DIMS[i], LAYER_DIMS[i + 1]
        key, kw, kb = jax.random.split(key, 3)
        bound = 1.0 / np.sqrt(fan_in)   # PyTorch default U(-1/sqrt(fan_in), .)
        w = jax.random.uniform(kw, (fan_in, fan_out), jnp.float32, -bound, bound)
        b = jax.random.uniform(kb, (1, fan_out), jnp.float32, -bound, bound)
        params.append((w, b))
    return params


def reference_forward_bf16(raw_x, params):
    """Pure-JAX reference mirroring the kernel's bf16-operand / f32-accum path."""
    h = (raw_x - jnp.asarray(X_MEAN)) / jnp.asarray(X_STD)
    for layer in range(NUM_LAYERS - 1):
        w, b = params[layer]
        h = jnp.dot(h.astype(jnp.bfloat16).astype(jnp.float32),
                    w.astype(jnp.bfloat16).astype(jnp.float32),
                    precision=jax.lax.Precision.HIGHEST) + b
        h = jnp.maximum(h, 0.0)
    w7, b7 = params[-1]
    return jnp.sum(h * w7[:, 0][None, :], axis=-1, keepdims=True) + b7


def reference_forward_f32(raw_x, params):
    """Pure-f32 reference matching the PyTorch module exactly."""
    h = (raw_x - jnp.asarray(X_MEAN)) / jnp.asarray(X_STD)
    for i, (w, b) in enumerate(params):
        h = jnp.dot(h, w, precision=jax.lax.Precision.HIGHEST) + b
        if i < NUM_LAYERS - 1:
            h = jnp.maximum(h, 0.0)
    return h


if __name__ == "__main__":
    key = jax.random.PRNGKey(0)
    key, k_sample = jax.random.split(key)

    # Small deterministic batch of raw 11-feature samples (exercises batch
    # padding 200 -> 256 and a 2-step grid).
    batch = 200
    raw = jax.random.normal(k_sample, (batch, NUM_FEATURES), jnp.float32) * 5.0 + 10.0

    params = init_params(key)

    out = moganet_forward(raw, params)
    out = jax.block_until_ready(out)

    # Tight check against a reference that mirrors the bf16 matmul operands.
    ref_bf16 = reference_forward_bf16(raw, params)
    np.testing.assert_allclose(np.asarray(out), np.asarray(ref_bf16),
                               rtol=2e-3, atol=2e-3)

    # Loose check against the exact f32 PyTorch-equivalent math.
    ref_f32 = reference_forward_f32(raw, params)
    np.testing.assert_allclose(np.asarray(out), np.asarray(ref_f32),
                               rtol=5e-2, atol=5e-2)

    print("KERNEL_OK")
</pallas_src>

<mosaic_0001>
module attributes {stable_mosaic.version = 11 : i64} {
  func.func @moganet_kernel(%arg0: i32, %arg1: memref<128x16xf32, #tpu.memory_space<vmem>>, %arg2: memref<1x16xf32, #tpu.memory_space<vmem>>, %arg3: memref<1x16xf32, #tpu.memory_space<vmem>>, %arg4: memref<16x32xbf16, #tpu.memory_space<vmem>>, %arg5: memref<1x32xf32, #tpu.memory_space<vmem>>, %arg6: memref<32x64xbf16, #tpu.memory_space<vmem>>, %arg7: memref<1x64xf32, #tpu.memory_space<vmem>>, %arg8: memref<64x128xbf16, #tpu.memory_space<vmem>>, %arg9: memref<1x128xf32, #tpu.memory_space<vmem>>, %arg10: memref<128x256xbf16, #tpu.memory_space<vmem>>, %arg11: memref<1x256xf32, #tpu.memory_space<vmem>>, %arg12: memref<256x128xbf16, #tpu.memory_space<vmem>>, %arg13: memref<1x128xf32, #tpu.memory_space<vmem>>, %arg14: memref<128x64xbf16, #tpu.memory_space<vmem>>, %arg15: memref<1x64xf32, #tpu.memory_space<vmem>>, %arg16: memref<64x32xbf16, #tpu.memory_space<vmem>>, %arg17: memref<1x32xf32, #tpu.memory_space<vmem>>, %arg18: memref<1x32xf32, #tpu.memory_space<vmem>>, %arg19: memref<1x1xf32, #tpu.memory_space<vmem>>, %arg20: memref<128x1xf32, #tpu.memory_space<vmem>>) attributes {dimension_semantics = [#tpu.dimension_semantics<parallel>], iteration_bounds = array<i64: 2>, scalar_prefetch = 0 : i64, scratch_operands = 0 : i64, tpu.core_type = #tpu.core_type<tc>, window_params = [{transform_indices = @transform_0, window_bounds = array<i64: 128, 16>}, {pipeline_mode = #tpu.pipeline_mode<synchronous>, transform_indices = @transform_1, window_bounds = array<i64: 1, 16>}, {pipeline_mode = #tpu.pipeline_mode<synchronous>, transform_indices = @transform_2, window_bounds = array<i64: 1, 16>}, {pipeline_mode = #tpu.pipeline_mode<synchronous>, transform_indices = @transform_3, window_bounds = array<i64: 16, 32>}, {pipeline_mode = #tpu.pipeline_mode<synchronous>, transform_indices = @transform_4, window_bounds = array<i64: 1, 32>}, {pipeline_mode = #tpu.pipeline_mode<synchronous>, transform_indices = @transform_5, window_bounds = array<i64: 32, 64>}, {pipeline_mode = #tpu.pipeline_mode<synchronous>, transform_indices = @transform_6, window_bounds = array<i64: 1, 64>}, {pipeline_mode = #tpu.pipeline_mode<synchronous>, transform_indices = @transform_7, window_bounds = array<i64: 64, 128>}, {pipeline_mode = #tpu.pipeline_mode<synchronous>, transform_indices = @transform_8, window_bounds = array<i64: 1, 128>}, {pipeline_mode = #tpu.pipeline_mode<synchronous>, transform_indices = @transform_9, window_bounds = array<i64: 128, 256>}, {pipeline_mode = #tpu.pipeline_mode<synchronous>, transform_indices = @transform_10, window_bounds = array<i64: 1, 256>}, {pipeline_mode = #tpu.pipeline_mode<synchronous>, transform_indices = @transform_11, window_bounds = array<i64: 256, 128>}, {pipeline_mode = #tpu.pipeline_mode<synchronous>, transform_indices = @transform_12, window_bounds = array<i64: 1, 128>}, {pipeline_mode = #tpu.pipeline_mode<synchronous>, transform_indices = @transform_13, window_bounds = array<i64: 128, 64>}, {pipeline_mode = #tpu.pipeline_mode<synchronous>, transform_indices = @transform_14, window_bounds = array<i64: 1, 64>}, {pipeline_mode = #tpu.pipeline_mode<synchronous>, transform_indices = @transform_15, window_bounds = array<i64: 64, 32>}, {pipeline_mode = #tpu.pipeline_mode<synchronous>, transform_indices = @transform_16, window_bounds = array<i64: 1, 32>}, {pipeline_mode = #tpu.pipeline_mode<synchronous>, transform_indices = @transform_17, window_bounds = array<i64: 1, 32>}, {pipeline_mode = #tpu.pipeline_mode<synchronous>, transform_indices = @transform_18, window_bounds = array<i64: 1, 1>}, {transform_indices = @transform_19, window_bounds = array<i64: 128, 1>}]} {
    %c0 = arith.constant 0 : index
    %c0_0 = arith.constant 0 : index
    %0 = vector.load %arg1[%c0, %c0_0] : memref<128x16xf32, #tpu.memory_space<vmem>>, vector<128x16xf32>
    %c0_1 = arith.constant 0 : index
    %c0_2 = arith.constant 0 : index
    %1 = vector.load %arg2[%c0_1, %c0_2] : memref<1x16xf32, #tpu.memory_space<vmem>>, vector<1x16xf32>
    %2 = vector.broadcast %1 : vector<1x16xf32> to vector<128x16xf32>
    %3 = arith.subf %0, %2 : vector<128x16xf32>
    %c0_3 = arith.constant 0 : index
    %c0_4 = arith.constant 0 : index
    %4 = vector.load %arg3[%c0_3, %c0_4] : memref<1x16xf32, #tpu.memory_space<vmem>>, vector<1x16xf32>
    %5 = vector.broadcast %4 : vector<1x16xf32> to vector<128x16xf32>
    %6 = arith.mulf %3, %5 : vector<128x16xf32>
    %c0_5 = arith.constant 0 : index
    %c0_6 = arith.constant 0 : index
    %7 = vector.load %arg4[%c0_5, %c0_6] : memref<16x32xbf16, #tpu.memory_space<vmem>>, vector<16x32xbf16>
    %c0_7 = arith.constant 0 : index
    %c0_8 = arith.constant 0 : index
    %8 = vector.load %arg5[%c0_7, %c0_8] : memref<1x32xf32, #tpu.memory_space<vmem>>, vector<1x32xf32>
    %9 = arith.truncf %6 : vector<128x16xf32> to vector<128x16xbf16>
    %cst = arith.constant dense<0.000000e+00> : vector<128x32xf32>
    %10 = tpu.matmul %9, %7, %cst {dimension_numbers = #tpu.dot_dimension_numbers<[1], [0], [0], [1], [0, 0, 1, 1], [], []>} : vector<128x16xbf16>, vector<16x32xbf16>, vector<128x32xf32> -> vector<128x32xf32>
    %11 = vector.broadcast %8 : vector<1x32xf32> to vector<128x32xf32>
    %12 = arith.addf %10, %11 : vector<128x32xf32>
    %cst_9 = arith.constant 0.000000e+00 : f32
    %13 = vector.broadcast %cst_9 : f32 to vector<128x32xf32>
    %14 = arith.maximumf %12, %13 : vector<128x32xf32>
    %c0_10 = arith.constant 0 : index
    %c0_11 = arith.constant 0 : index
    %15 = vector.load %arg6[%c0_10, %c0_11] : memref<32x64xbf16, #tpu.memory_space<vmem>>, vector<32x64xbf16>
    %c0_12 = arith.constant 0 : index
    %c0_13 = arith.constant 0 : index
    %16 = vector.load %arg7[%c0_12, %c0_13] : memref<1x64xf32, #tpu.memory_space<vmem>>, vector<1x64xf32>
    %17 = arith.truncf %14 : vector<128x32xf32> to vector<128x32xbf16>
    %cst_14 = arith.constant dense<0.000000e+00> : vector<128x64xf32>
    %18 = tpu.matmul %17, %15, %cst_14 {dimension_numbers = #tpu.dot_dimension_numbers<[1], [0], [0], [1], [0, 0, 1, 1], [], []>} : vector<128x32xbf16>, vector<32x64xbf16>, vector<128x64xf32> -> vector<128x64xf32>
    %19 = vector.broadcast %16 : vector<1x64xf32> to vector<128x64xf32>
    %20 = arith.addf %18, %19 : vector<128x64xf32>
    %cst_15 = arith.constant 0.000000e+00 : f32
    %21 = vector.broadcast %cst_15 : f32 to vector<128x64xf32>
    %22 = arith.maximumf %20, %21 : vector<128x64xf32>
    %c0_16 = arith.constant 0 : index
    %c0_17 = arith.constant 0 : index
    %23 = vector.load %arg8[%c0_16, %c0_17] : memref<64x128xbf16, #tpu.memory_space<vmem>>, vector<64x128xbf16>
    %c0_18 = arith.constant 0 : index
    %c0_19 = arith.constant 0 : index
    %24 = vector.load %arg9[%c0_18, %c0_19] : memref<1x128xf32, #tpu.memory_space<vmem>>, vector<1x128xf32>
    %25 = arith.truncf %22 : vector<128x64xf32> to vector<128x64xbf16>
    %cst_20 = arith.constant dense<0.000000e+00> : vector<128x128xf32>
    %26 = tpu.matmul %25, %23, %cst_20 {dimension_numbers = #tpu.dot_dimension_numbers<[1], [0], [0], [1], [0, 0, 1, 1], [], []>} : vector<128x64xbf16>, vector<64x128xbf16>, vector<128x128xf32> -> vector<128x128xf32>
    %27 = vector.broadcast %24 : vector<1x128xf32> to vector<128x128xf32>
    %28 = arith.addf %26, %27 : vector<128x128xf32>
    %cst_21 = arith.constant 0.000000e+00 : f32
    %29 = vector.broadcast %cst_21 : f32 to vector<128x128xf32>
    %30 = arith.maximumf %28, %29 : vector<128x128xf32>
    %c0_22 = arith.constant 0 : index
    %c0_23 = arith.constant 0 : index
    %31 = vector.load %arg10[%c0_22, %c0_23] : memref<128x256xbf16, #tpu.memory_space<vmem>>, vector<128x256xbf16>
    %c0_24 = arith.constant 0 : index
    %c0_25 = arith.constant 0 : index
    %32 = vector.load %arg11[%c0_24, %c0_25] : memref<1x256xf32, #tpu.memory_space<vmem>>, vector<1x256xf32>
    %33 = arith.truncf %30 : vector<128x128xf32> to vector<128x128xbf16>
    %cst_26 = arith.constant dense<0.000000e+00> : vector<128x256xf32>
    %34 = tpu.matmul %33, %31, %cst_26 {dimension_numbers = #tpu.dot_dimension_numbers<[1], [0], [0], [1], [0, 0, 1, 1], [], []>} : vector<128x128xbf16>, vector<128x256xbf16>, vector<128x256xf32> -> vector<128x256xf32>
    %35 = vector.broadcast %32 : vector<1x256xf32> to vector<128x256xf32>
    %36 = arith.addf %34, %35 : vector<128x256xf32>
    %cst_27 = arith.constant 0.000000e+00 : f32
    %37 = vector.broadcast %cst_27 : f32 to vector<128x256xf32>
    %38 = arith.maximumf %36, %37 : vector<128x256xf32>
    %c0_28 = arith.constant 0 : index
    %c0_29 = arith.constant 0 : index
    %39 = vector.load %arg12[%c0_28, %c0_29] : memref<256x128xbf16, #tpu.memory_space<vmem>>, vector<256x128xbf16>
    %c0_30 = arith.constant 0 : index
    %c0_31 = arith.constant 0 : index
    %40 = vector.load %arg13[%c0_30, %c0_31] : memref<1x128xf32, #tpu.memory_space<vmem>>, vector<1x128xf32>
    %41 = arith.truncf %38 : vector<128x256xf32> to vector<128x256xbf16>
    %cst_32 = arith.constant dense<0.000000e+00> : vector<128x128xf32>
    %42 = tpu.matmul %41, %39, %cst_32 {dimension_numbers = #tpu.dot_dimension_numbers<[1], [0], [0], [1], [0, 0, 1, 1], [], []>} : vector<128x256xbf16>, vector<256x128xbf16>, vector<128x128xf32> -> vector<128x128xf32>
    %43 = vector.broadcast %40 : vector<1x128xf32> to vector<128x128xf32>
    %44 = arith.addf %42, %43 : vector<128x128xf32>
    %cst_33 = arith.constant 0.000000e+00 : f32
    %45 = vector.broadcast %cst_33 : f32 to vector<128x128xf32>
    %46 = arith.maximumf %44, %45 : vector<128x128xf32>
    %c0_34 = arith.constant 0 : index
    %c0_35 = arith.constant 0 : index
    %47 = vector.load %arg14[%c0_34, %c0_35] : memref<128x64xbf16, #tpu.memory_space<vmem>>, vector<128x64xbf16>
    %c0_36 = arith.constant 0 : index
    %c0_37 = arith.constant 0 : index
    %48 = vector.load %arg15[%c0_36, %c0_37] : memref<1x64xf32, #tpu.memory_space<vmem>>, vector<1x64xf32>
    %49 = arith.truncf %46 : vector<128x128xf32> to vector<128x128xbf16>
    %cst_38 = arith.constant dense<0.000000e+00> : vector<128x64xf32>
    %50 = tpu.matmul %49, %47, %cst_38 {dimension_numbers = #tpu.dot_dimension_numbers<[1], [0], [0], [1], [0, 0, 1, 1], [], []>} : vector<128x128xbf16>, vector<128x64xbf16>, vector<128x64xf32> -> vector<128x64xf32>
    %51 = vector.broadcast %48 : vector<1x64xf32> to vector<128x64xf32>
    %52 = arith.addf %50, %51 : vector<128x64xf32>
    %cst_39 = arith.constant 0.000000e+00 : f32
    %53 = vector.broadcast %cst_39 : f32 to vector<128x64xf32>
    %54 = arith.maximumf %52, %53 : vector<128x64xf32>
    %c0_40 = arith.constant 0 : index
    %c0_41 = arith.constant 0 : index
    %55 = vector.load %arg16[%c0_40, %c0_41] : memref<64x32xbf16, #tpu.memory_space<vmem>>, vector<64x32xbf16>
    %c0_42 = arith.constant 0 : index
    %c0_43 = arith.constant 0 : index
    %56 = vector.load %arg17[%c0_42, %c0_43] : memref<1x32xf32, #tpu.memory_space<vmem>>, vector<1x32xf32>
    %57 = arith.truncf %54 : vector<128x64xf32> to vector<128x64xbf16>
    %cst_44 = arith.constant dense<0.000000e+00> : vector<128x32xf32>
    %58 = tpu.matmul %57, %55, %cst_44 {dimension_numbers = #tpu.dot_dimension_numbers<[1], [0], [0], [1], [0, 0, 1, 1], [], []>} : vector<128x64xbf16>, vector<64x32xbf16>, vector<128x32xf32> -> vector<128x32xf32>
    %59 = vector.broadcast %56 : vector<1x32xf32> to vector<128x32xf32>
    %60 = arith.addf %58, %59 : vector<128x32xf32>
    %cst_45 = arith.constant 0.000000e+00 : f32
    %61 = vector.broadcast %cst_45 : f32 to vector<128x32xf32>
    %62 = arith.maximumf %60, %61 : vector<128x32xf32>
    %c0_46 = arith.constant 0 : index
    %c0_47 = arith.constant 0 : index
    %63 = vector.load %arg18[%c0_46, %c0_47] : memref<1x32xf32, #tpu.memory_space<vmem>>, vector<1x32xf32>
    %c0_48 = arith.constant 0 : index
    %c0_49 = arith.constant 0 : index
    %64 = vector.load %arg19[%c0_48, %c0_49] : memref<1x1xf32, #tpu.memory_space<vmem>>, vector<1x1xf32>
    %65 = vector.broadcast %63 : vector<1x32xf32> to vector<128x32xf32>
    %66 = arith.mulf %62, %65 : vector<128x32xf32>
    %cst_50 = arith.constant dense<0.000000e+00> : vector<128xf32>
    %67 = vector.multi_reduction <add>, %66, %cst_50 [1] : vector<128x32xf32> to vector<128xf32>
    %68 = vector.shape_cast %67 : vector<128xf32> to vector<128x1xf32>
    %69 = vector.broadcast %64 : vector<1x1xf32> to vector<128x1xf32>
    %70 = arith.addf %68, %69 : vector<128x1xf32>
    %c0_51 = arith.constant 0 : index
    %c0_52 = arith.constant 0 : index
    %71 = vector.load %arg20[%c0_51, %c0_52] : memref<128x1xf32, #tpu.memory_space<vmem>>, vector<128x1xf32>
    tpu.vector_store %arg20[%c0_51, %c0_52], %70 {strides = array<i32>} : memref<128x1xf32, #tpu.memory_space<vmem>>, vector<128x1xf32>,
    return
  }
  func.func @transform_0(%arg0: i32) -> (i32, i32) {
    %c0_i32 = arith.constant 0 : i32
    %c0_i32_0 = arith.constant 0 : i32
    return %arg0, %c0_i32 : i32, i32
  }
  func.func @transform_1(%arg0: i32) -> (i32, i32) {
    %c0_i32 = arith.constant 0 : i32
    %c0_i32_0 = arith.constant 0 : i32
    %c0_i32_1 = arith.constant 0 : i32
    return %c0_i32, %c0_i32_0 : i32, i32
  }
  func.func @transform_2(%arg0: i32) -> (i32, i32) {
    %c0_i32 = arith.constant 0 : i32
    %c0_i32_0 = arith.constant 0 : i32
    %c0_i32_1 = arith.constant 0 : i32
    return %c0_i32, %c0_i32_0 : i32, i32
  }
  func.func @transform_3(%arg0: i32) -> (i32, i32) {
    %c0_i32 = arith.constant 0 : i32
    %c0_i32_0 = arith.constant 0 : i32
    %c0_i32_1 = arith.constant 0 : i32
    return %c0_i32, %c0_i32_0 : i32, i32
  }
  func.func @transform_4(%arg0: i32) -> (i32, i32) {
    %c0_i32 = arith.constant 0 : i32
    %c0_i32_0 = arith.constant 0 : i32
    %c0_i32_1 = arith.constant 0 : i32
    return %c0_i32, %c0_i32_0 : i32, i32
  }
  func.func @transform_5(%arg0: i32) -> (i32, i32) {
    %c0_i32 = arith.constant 0 : i32
    %c0_i32_0 = arith.constant 0 : i32
    %c0_i32_1 = arith.constant 0 : i32
    return %c0_i32, %c0_i32_0 : i32, i32
  }
  func.func @transform_6(%arg0: i32) -> (i32, i32) {
    %c0_i32 = arith.constant 0 : i32
    %c0_i32_0 = arith.constant 0 : i32
    %c0_i32_1 = arith.constant 0 : i32
    return %c0_i32, %c0_i32_0 : i32, i32
  }
  func.func @transform_7(%arg0: i32) -> (i32, i32) {
    %c0_i32 = arith.constant 0 : i32
    %c0_i32_0 = arith.constant 0 : i32
    %c0_i32_1 = arith.constant 0 : i32
    return %c0_i32, %c0_i32_0 : i32, i32
  }
  func.func @transform_8(%arg0: i32) -> (i32, i32) {
    %c0_i32 = arith.constant 0 : i32
    %c0_i32_0 = arith.constant 0 : i32
    %c0_i32_1 = arith.constant 0 : i32
    return %c0_i32, %c0_i32_0 : i32, i32
  }
  func.func @transform_9(%arg0: i32) -> (i32, i32) {
    %c0_i32 = arith.constant 0 : i32
    %c0_i32_0 = arith.constant 0 : i32
    %c0_i32_1 = arith.constant 0 : i32
    return %c0_i32, %c0_i32_0 : i32, i32
  }
  func.func @transform_10(%arg0: i32) -> (i32, i32) {
    %c0_i32 = arith.constant 0 : i32
    %c0_i32_0 = arith.constant 0 : i32
    %c0_i32_1 = arith.constant 0 : i32
    return %c0_i32, %c0_i32_0 : i32, i32
  }
  func.func @transform_11(%arg0: i32) -> (i32, i32) {
    %c0_i32 = arith.constant 0 : i32
    %c0_i32_0 = arith.constant 0 : i32
    %c0_i32_1 = arith.constant 0 : i32
    return %c0_i32, %c0_i32_0 : i32, i32
  }
  func.func @transform_12(%arg0: i32) -> (i32, i32) {
    %c0_i32 = arith.constant 0 : i32
    %c0_i32_0 = arith.constant 0 : i32
    %c0_i32_1 = arith.constant 0 : i32
    return %c0_i32, %c0_i32_0 : i32, i32
  }
  func.func @transform_13(%arg0: i32) -> (i32, i32) {
    %c0_i32 = arith.constant 0 : i32
    %c0_i32_0 = arith.constant 0 : i32
    %c0_i32_1 = arith.constant 0 : i32
    return %c0_i32, %c0_i32_0 : i32, i32
  }
  func.func @transform_14(%arg0: i32) -> (i32, i32) {
    %c0_i32 = arith.constant 0 : i32
    %c0_i32_0 = arith.constant 0 : i32
    %c0_i32_1 = arith.constant 0 : i32
    return %c0_i32, %c0_i32_0 : i32, i32
  }
  func.func @transform_15(%arg0: i32) -> (i32, i32) {
    %c0_i32 = arith.constant 0 : i32
    %c0_i32_0 = arith.constant 0 : i32
    %c0_i32_1 = arith.constant 0 : i32
    return %c0_i32, %c0_i32_0 : i32, i32
  }
  func.func @transform_16(%arg0: i32) -> (i32, i32) {
    %c0_i32 = arith.constant 0 : i32
    %c0_i32_0 = arith.constant 0 : i32
    %c0_i32_1 = arith.constant 0 : i32
    return %c0_i32, %c0_i32_0 : i32, i32
  }
  func.func @transform_17(%arg0: i32) -> (i32, i32) {
    %c0_i32 = arith.constant 0 : i32
    %c0_i32_0 = arith.constant 0 : i32
    %c0_i32_1 = arith.constant 0 : i32
    return %c0_i32, %c0_i32_0 : i32, i32
  }
  func.func @transform_18(%arg0: i32) -> (i32, i32) {
    %c0_i32 = arith.constant 0 : i32
    %c0_i32_0 = arith.constant 0 : i32
    %c0_i32_1 = arith.constant 0 : i32
    return %c0_i32, %c0_i32_0 : i32, i32
  }
  func.func @transform_19(%arg0: i32) -> (i32, i32) {
    %c0_i32 = arith.constant 0 : i32
    %c0_i32_0 = arith.constant 0 : i32
    return %arg0, %c0_i32 : i32, i32
  }
}

</mosaic_0001>

<llo_original>
// kernel: tpu_custom_call.1
$region0: #{tpu_custom_call.1}
  #allocation0 [shape = 'u32[]', space=smem, size = 0x4, offset = 0x4, fixed_abs, tag = 'smem constant byte address 0x4 - core index']
  #allocation1 [shape = 'u32[144,128]{1,0:T(1,128)}', space=vmem, size = 0x12000, scoped, tag = 'internal scratch']
  #allocation2 [shape = 'f32[1,1]{1,0:T(1,128)S(1)}', space=vmem, size = 0x200, scoped, tag = 'scoped memory for tpu_custom_call.1']
  %s0 = inlined_call_operand.vmem [shape: f32[256,16], index: 0, kind: input, shape index: {}]
  %s1 = inlined_call_operand.vmem [shape: f32[1,16], index: 1, kind: input, shape index: {}]
  %s2 = inlined_call_operand.vmem [shape: f32[1,16], index: 2, kind: input, shape index: {}]
  %s3 = inlined_call_operand.vmem [shape: bf16[16,32], index: 3, kind: input, shape index: {}]
  %s4 = inlined_call_operand.vmem [shape: f32[1,32], index: 4, kind: input, shape index: {}]
  %s5 = inlined_call_operand.vmem [shape: bf16[32,64], index: 5, kind: input, shape index: {}]
  %s6 = inlined_call_operand.vmem [shape: f32[1,64], index: 6, kind: input, shape index: {}]
  %s7 = inlined_call_operand.vmem [shape: bf16[64,128], index: 7, kind: input, shape index: {}]
  %s8 = inlined_call_operand.vmem [shape: f32[1,128], index: 8, kind: input, shape index: {}]
  %s9 = inlined_call_operand.vmem [shape: bf16[128,256], index: 9, kind: input, shape index: {}]
  %s10 = inlined_call_operand.vmem [shape: f32[1,256], index: 10, kind: input, shape index: {}]
  %s11 = inlined_call_operand.vmem [shape: bf16[256,128], index: 11, kind: input, shape index: {}]
  %s12 = inlined_call_operand.vmem [shape: f32[1,128], index: 12, kind: input, shape index: {}]
  %s13 = inlined_call_operand.vmem [shape: bf16[128,64], index: 13, kind: input, shape index: {}]
  %s14 = inlined_call_operand.vmem [shape: f32[1,64], index: 14, kind: input, shape index: {}]
  %s15 = inlined_call_operand.vmem [shape: bf16[64,32], index: 15, kind: input, shape index: {}]
  %s16 = inlined_call_operand.vmem [shape: f32[1,32], index: 16, kind: input, shape index: {}]
  %s17 = inlined_call_operand.vmem [shape: f32[1,32], index: 17, kind: input, shape index: {}]
  %s18 = inlined_call_operand.<no memory space> [shape: f32[1,1], index: 18, kind: input, shape index: {}]
  %s19 = inlined_call_operand.vmem [shape: f32[256,1], index: 19, kind: output, shape index: {}]
  %s20 = sld [smem:[#allocation0]]
  $region109: #{tpu_custom_call.1} parent=0
    _
  %s22 = ssub.s32 1, %s20
  %s23 = scalar_select 0, %s22, %s20
  %v24 = vstv %s18
  %25 = vst [vmem:[#allocation2] sm:$0x1] %v24
  loop: start=0, step=1, limit=4
  $region2: #{tpu_custom_call.1} parent=0 // loop_pre_header
    _
  $region3: #{tpu_custom_call.1} parent=0 // loop_header
    %s27 = sphi 0, %s31
    %p28 = scmp.ge.s32.totalorder %s27, 4
    %s37 = sphi 0, %s39
    %s40 = sphi 0, %s37
    %s41 = sphi 0, %s40
    %s57 = sphi 0, %s41
    %s61 = sphi 0, %s61
    %s63 = sphi 0, %s61
    %s64 = sphi 0, %s63
    %s78 = sphi 0, %s64
    %s82 = sphi 0, %s82
    %s84 = sphi 0, %s82
    %s85 = sphi 0, %s84
    %s99 = sphi 0, %s85
    %s103 = sphi 0, %s103
    %s105 = sphi 0, %s103
    %s106 = sphi 0, %s105
    %s120 = sphi 0, %s106
    %s124 = sphi 0, %s124
    %s126 = sphi 0, %s124
    %s127 = sphi 0, %s126
    %s141 = sphi 0, %s127
    %s145 = sphi 0, %s145
    %s147 = sphi 0, %s145
    %s148 = sphi 0, %s147
    %s162 = sphi 0, %s148
    %s166 = sphi 0, %s166
    %s168 = sphi 0, %s166
    %s169 = sphi 0, %s168
    %s183 = sphi 0, %s169
    %s187 = sphi 0, %s187
    %s189 = sphi 0, %s187
    %s190 = sphi 0, %s189
    %s204 = sphi 0, %s190
    %s208 = sphi 0, %s208
    %s210 = sphi 0, %s208
    %s211 = sphi 0, %s210
    %s225 = sphi 0, %s211
    %s229 = sphi 0, %s229
    %s231 = sphi 0, %s229
    %s232 = sphi 0, %s231
    %s246 = sphi 0, %s232
    %s250 = sphi 0, %s250
    %s252 = sphi 0, %s250
    %s253 = sphi 0, %s252
    %s267 = sphi 0, %s253
    %s271 = sphi 0, %s271
    %s273 = sphi 0, %s271
    %s274 = sphi 0, %s273
    %s288 = sphi 0, %s274
    %s292 = sphi 0, %s292
    %s294 = sphi 0, %s292
    %s295 = sphi 0, %s294
    %s309 = sphi 0, %s295
    %s313 = sphi 0, %s313
    %s315 = sphi 0, %s313
    %s316 = sphi 0, %s315
    %s330 = sphi 0, %s316
    %s334 = sphi 0, %s334
    %s336 = sphi 0, %s334
    %s337 = sphi 0, %s336
    %s351 = sphi 0, %s337
    %s355 = sphi 0, %s355
    %s357 = sphi 0, %s355
    %s358 = sphi 0, %s357
    %s372 = sphi 0, %s358
    %s376 = sphi 0, %s376
    %s378 = sphi 0, %s376
    %s379 = sphi 0, %s378
    %s393 = sphi 0, %s379
    %s397 = sphi 0, %s397
    %s399 = sphi 0, %s397
    %s400 = sphi 0, %s399
    %s414 = sphi 0, %s400
    %s418 = sphi 0, %s418
    %s420 = sphi 0, %s418
    %s421 = sphi 0, %s420
    %s435 = sphi 0, %s421
    %s441 = sphi 0, %s443
    %s444 = sphi 0, %s441
    %s445 = sphi 0, %s444
    %s461 = sphi 0, %s445
  $region4: #{tpu_custom_call.1} parent=0 // loop_header_branch
    %30 = sbr.rel (%p28) target = $region8
  $region5: #{tpu_custom_call.1} parent=0 // loop_body
    %s32 = ssub.s32 %s27, 1
    %s33 = ssub.s32 %s27, 2
    %s34 = sadd.s32 %s27, 1
    %s35 = ssub.s32 %s27, %s34
    %p36 = scmp.eq.s32.totalorder %s35, 0
    %s38 = sadd.s32 %s37, 1
    %s39 = scalar_select %p36, %s37, %s38
    %p42 = pneg %p36
    %p43 = scmp.eq.s32.totalorder %s27, 1
    %p44 = por %p42, %p43
    %p45 = scmp.ne.s32.totalorder %s37, %s40
    %p46 = scmp.eq.s32.totalorder %s27, 0
    %p47 = por %p45, %p46
    %p48 = scmp.ne.s32.totalorder %s37, %s40
    %p49 = scmp.eq.s32.totalorder %s32, 1
    %p50 = por %p48, %p49
    %p51 = scmp.ne.s32.totalorder %s40, %s41
    %p52 = scmp.eq.s32.totalorder %s32, 0
    %p53 = por %p51, %p52
    %p54 = scmp.ne.s32.totalorder %s40, %s41
    %p55 = scmp.eq.s32.totalorder %s33, 1
    %p56 = por %p54, %p55
    %p58 = scmp.ne.s32.totalorder %s41, %s57
    %p59 = scmp.eq.s32.totalorder %s33, 0
    %p60 = por %p58, %p59
    %s62 = sadd.s32 %s61, 1
    %p65 = scmp.eq.s32.totalorder %s27, 1
    %p66 = scmp.ne.s32.totalorder %s61, %s63
    %p67 = scmp.eq.s32.totalorder %s27, 0
    %p68 = por %p66, %p67
    %p69 = scmp.ne.s32.totalorder %s61, %s63
    %p70 = scmp.eq.s32.totalorder %s32, 1
    %p71 = por %p69, %p70
    %p72 = scmp.ne.s32.totalorder %s63, %s64
    %p73 = scmp.eq.s32.totalorder %s32, 0
    %p74 = por %p72, %p73
    %p75 = scmp.ne.s32.totalorder %s63, %s64
    %p76 = scmp.eq.s32.totalorder %s33, 1
    %p77 = por %p75, %p76
    %p79 = scmp.ne.s32.totalorder %s64, %s78
    %p80 = scmp.eq.s32.totalorder %s33, 0
    %p81 = por %p79, %p80
    %s83 = sadd.s32 %s82, 1
    %p86 = scmp.eq.s32.totalorder %s27, 1
    %p87 = scmp.ne.s32.totalorder %s82, %s84
    %p88 = scmp.eq.s32.totalorder %s27, 0
    %p89 = por %p87, %p88
    %p90 = scmp.ne.s32.totalorder %s82, %s84
    %p91 = scmp.eq.s32.totalorder %s32, 1
    %p92 = por %p90, %p91
    %p93 = scmp.ne.s32.totalorder %s84, %s85
    %p94 = scmp.eq.s32.totalorder %s32, 0
    %p95 = por %p93, %p94
    %p96 = scmp.ne.s32.totalorder %s84, %s85
    %p97 = scmp.eq.s32.totalorder %s33, 1
    %p98 = por %p96, %p97
    %p100 = scmp.ne.s32.totalorder %s85, %s99
    %p101 = scmp.eq.s32.totalorder %s33, 0
    %p102 = por %p100, %p101
    %s104 = sadd.s32 %s103, 1
    %p107 = scmp.eq.s32.totalorder %s27, 1
    %p108 = scmp.ne.s32.totalorder %s103, %s105
    %p109 = scmp.eq.s32.totalorder %s27, 0
    %p110 = por %p108, %p109
    %p111 = scmp.ne.s32.totalorder %s103, %s105
    %p112 = scmp.eq.s32.totalorder %s32, 1
    %p113 = por %p111, %p112
    %p114 = scmp.ne.s32.totalorder %s105, %s106
    %p115 = scmp.eq.s32.totalorder %s32, 0
    %p116 = por %p114, %p115
    %p117 = scmp.ne.s32.totalorder %s105, %s106
    %p118 = scmp.eq.s32.totalorder %s33, 1
    %p119 = por %p117, %p118
    %p121 = scmp.ne.s32.totalorder %s106, %s120
    %p122 = scmp.eq.s32.totalorder %s33, 0
    %p123 = por %p121, %p122
    %s125 = sadd.s32 %s124, 1
    %p128 = scmp.eq.s32.totalorder %s27, 1
    %p129 = scmp.ne.s32.totalorder %s124, %s126
    %p130 = scmp.eq.s32.totalorder %s27, 0
    %p131 = por %p129, %p130
    %p132 = scmp.ne.s32.totalorder %s124, %s126
    %p133 = scmp.eq.s32.totalorder %s32, 1
    %p134 = por %p132, %p133
    %p135 = scmp.ne.s32.totalorder %s126, %s127
    %p136 = scmp.eq.s32.totalorder %s32, 0
    %p137 = por %p135, %p136
    %p138 = scmp.ne.s32.totalorder %s126, %s127
    %p139 = scmp.eq.s32.totalorder %s33, 1
    %p140 = por %p138, %p139
    %p142 = scmp.ne.s32.totalorder %s127, %s141
    %p143 = scmp.eq.s32.totalorder %s33, 0
    %p144 = por %p142, %p143
    %s146 = sadd.s32 %s145, 1
    %p149 = scmp.eq.s32.totalorder %s27, 1
    %p150 = scmp.ne.s32.totalorder %s145, %s147
    %p151 = scmp.eq.s32.totalorder %s27, 0
    %p152 = por %p150, %p151
    %p153 = scmp.ne.s32.totalorder %s145, %s147
    %p154 = scmp.eq.s32.totalorder %s32, 1
    %p155 = por %p153, %p154
    %p156 = scmp.ne.s32.totalorder %s147, %s148
    %p157 = scmp.eq.s32.totalorder %s32, 0
    %p158 = por %p156, %p157
    %p159 = scmp.ne.s32.totalorder %s147, %s148
    %p160 = scmp.eq.s32.totalorder %s33, 1
    %p161 = por %p159, %p160
    %p163 = scmp.ne.s32.totalorder %s148, %s162
    %p164 = scmp.eq.s32.totalorder %s33, 0
    %p165 = por %p163, %p164
    %s167 = sadd.s32 %s166, 1
    %p170 = scmp.eq.s32.totalorder %s27, 1
    %p171 = scmp.ne.s32.totalorder %s166, %s168
    %p172 = scmp.eq.s32.totalorder %s27, 0
    %p173 = por %p171, %p172
    %p174 = scmp.ne.s32.totalorder %s166, %s168
    %p175 = scmp.eq.s32.totalorder %s32, 1
    %p176 = por %p174, %p175
    %p177 = scmp.ne.s32.totalorder %s168, %s169
    %p178 = scmp.eq.s32.totalorder %s32, 0
    %p179 = por %p177, %p178
    %p180 = scmp.ne.s32.totalorder %s168, %s169
    %p181 = scmp.eq.s32.totalorder %s33, 1
    %p182 = por %p180, %p181
    %p184 = scmp.ne.s32.totalorder %s169, %s183
    %p185 = scmp.eq.s32.totalorder %s33, 0
    %p186 = por %p184, %p185
    %s188 = sadd.s32 %s187, 1
    %p191 = scmp.eq.s32.totalorder %s27, 1
    %p192 = scmp.ne.s32.totalorder %s187, %s189
    %p193 = scmp.eq.s32.totalorder %s27, 0
    %p194 = por %p192, %p193
    %p195 = scmp.ne.s32.totalorder %s187, %s189
    %p196 = scmp.eq.s32.totalorder %s32, 1
    %p197 = por %p195, %p196
    %p198 = scmp.ne.s32.totalorder %s189, %s190
    %p199 = scmp.eq.s32.totalorder %s32, 0
    %p200 = por %p198, %p199
    %p201 = scmp.ne.s32.totalorder %s189, %s190
    %p202 = scmp.eq.s32.totalorder %s33, 1
    %p203 = por %p201, %p202
    %p205 = scmp.ne.s32.totalorder %s190, %s204
    %p206 = scmp.eq.s32.totalorder %s33, 0
    %p207 = por %p205, %p206
    %s209 = sadd.s32 %s208, 1
    %p212 = scmp.eq.s32.totalorder %s27, 1
    %p213 = scmp.ne.s32.totalorder %s208, %s210
    %p214 = scmp.eq.s32.totalorder %s27, 0
    %p215 = por %p213, %p214
    %p216 = scmp.ne.s32.totalorder %s208, %s210
    %p217 = scmp.eq.s32.totalorder %s32, 1
    %p218 = por %p216, %p217
    %p219 = scmp.ne.s32.totalorder %s210, %s211
    %p220 = scmp.eq.s32.totalorder %s32, 0
    %p221 = por %p219, %p220
    %p222 = scmp.ne.s32.totalorder %s210, %s211
    %p223 = scmp.eq.s32.totalorder %s33, 1
    %p224 = por %p222, %p223
    %p226 = scmp.ne.s32.totalorder %s211, %s225
    %p227 = scmp.eq.s32.totalorder %s33, 0
    %p228 = por %p226, %p227
    %s230 = sadd.s32 %s229, 1
    %p233 = scmp.eq.s32.totalorder %s27, 1
    %p234 = scmp.ne.s32.totalorder %s229, %s231
    %p235 = scmp.eq.s32.totalorder %s27, 0
    %p236 = por %p234, %p235
    %p237 = scmp.ne.s32.totalorder %s229, %s231
    %p238 = scmp.eq.s32.totalorder %s32, 1
    %p239 = por %p237, %p238
    %p240 = scmp.ne.s32.totalorder %s231, %s232
    %p241 = scmp.eq.s32.totalorder %s32, 0
    %p242 = por %p240, %p241
    %p243 = scmp.ne.s32.totalorder %s231, %s232
    %p244 = scmp.eq.s32.totalorder %s33, 1
    %p245 = por %p243, %p244
    %p247 = scmp.ne.s32.totalorder %s232, %s246
    %p248 = scmp.eq.s32.totalorder %s33, 0
    %p249 = por %p247, %p248
    %s251 = sadd.s32 %s250, 1
    %p254 = scmp.eq.s32.totalorder %s27, 1
    %p255 = scmp.ne.s32.totalorder %s250, %s252
    %p256 = scmp.eq.s32.totalorder %s27, 0
    %p257 = por %p255, %p256
    %p258 = scmp.ne.s32.totalorder %s250, %s252
    %p259 = scmp.eq.s32.totalorder %s32, 1
    %p260 = por %p258, %p259
    %p261 = scmp.ne.s32.totalorder %s252, %s253
    %p262 = scmp.eq.s32.totalorder %s32, 0
    %p263 = por %p261, %p262
    %p264 = scmp.ne.s32.totalorder %s252, %s253
    %p265 = scmp.eq.s32.totalorder %s33, 1
    %p266 = por %p264, %p265
    %p268 = scmp.ne.s32.totalorder %s253, %s267
    %p269 = scmp.eq.s32.totalorder %s33, 0
    %p270 = por %p268, %p269
    %s272 = sadd.s32 %s271, 1
    %p275 = scmp.eq.s32.totalorder %s27, 1
    %p276 = scmp.ne.s32.totalorder %s271, %s273
    %p277 = scmp.eq.s32.totalorder %s27, 0
    %p278 = por %p276, %p277
    %p279 = scmp.ne.s32.totalorder %s271, %s273
    %p280 = scmp.eq.s32.totalorder %s32, 1
    %p281 = por %p279, %p280
    %p282 = scmp.ne.s32.totalorder %s273, %s274
    %p283 = scmp.eq.s32.totalorder %s32, 0
    %p284 = por %p282, %p283
    %p285 = scmp.ne.s32.totalorder %s273, %s274
    %p286 = scmp.eq.s32.totalorder %s33, 1
    %p287 = por %p285, %p286
    %p289 = scmp.ne.s32.totalorder %s274, %s288
    %p290 = scmp.eq.s32.totalorder %s33, 0
    %p291 = por %p289, %p290
    %s293 = sadd.s32 %s292, 1
    %p296 = scmp.eq.s32.totalorder %s27, 1
    %p297 = scmp.ne.s32.totalorder %s292, %s294
    %p298 = scmp.eq.s32.totalorder %s27, 0
    %p299 = por %p297, %p298
    %p300 = scmp.ne.s32.totalorder %s292, %s294
    %p301 = scmp.eq.s32.totalorder %s32, 1
    %p302 = por %p300, %p301
    %p303 = scmp.ne.s32.totalorder %s294, %s295
    %p304 = scmp.eq.s32.totalorder %s32, 0
    %p305 = por %p303, %p304
    %p306 = scmp.ne.s32.totalorder %s294, %s295
    %p307 = scmp.eq.s32.totalorder %s33, 1
    %p308 = por %p306, %p307
    %p310 = scmp.ne.s32.totalorder %s295, %s309
    %p311 = scmp.eq.s32.totalorder %s33, 0
    %p312 = por %p310, %p311
    %s314 = sadd.s32 %s313, 1
    %p317 = scmp.eq.s32.totalorder %s27, 1
    %p318 = scmp.ne.s32.totalorder %s313, %s315
    %p319 = scmp.eq.s32.totalorder %s27, 0
    %p320 = por %p318, %p319
    %p321 = scmp.ne.s32.totalorder %s313, %s315
    %p322 = scmp.eq.s32.totalorder %s32, 1
    %p323 = por %p321, %p322
    %p324 = scmp.ne.s32.totalorder %s315, %s316
    %p325 = scmp.eq.s32.totalorder %s32, 0
    %p326 = por %p324, %p325
    %p327 = scmp.ne.s32.totalorder %s315, %s316
    %p328 = scmp.eq.s32.totalorder %s33, 1
    %p329 = por %p327, %p328
    %p331 = scmp.ne.s32.totalorder %s316, %s330
    %p332 = scmp.eq.s32.totalorder %s33, 0
    %p333 = por %p331, %p332
    %s335 = sadd.s32 %s334, 1
    %p338 = scmp.eq.s32.totalorder %s27, 1
    %p339 = scmp.ne.s32.totalorder %s334, %s336
    %p340 = scmp.eq.s32.totalorder %s27, 0
    %p341 = por %p339, %p340
    %p342 = scmp.ne.s32.totalorder %s334, %s336
    %p343 = scmp.eq.s32.totalorder %s32, 1
    %p344 = por %p342, %p343
    %p345 = scmp.ne.s32.totalorder %s336, %s337
    %p346 = scmp.eq.s32.totalorder %s32, 0
    %p347 = por %p345, %p346
    %p348 = scmp.ne.s32.totalorder %s336, %s337
    %p349 = scmp.eq.s32.totalorder %s33, 1
    %p350 = por %p348, %p349
    %p352 = scmp.ne.s32.totalorder %s337, %s351
    %p353 = scmp.eq.s32.totalorder %s33, 0
    %p354 = por %p352, %p353
    %s356 = sadd.s32 %s355, 1
    %p359 = scmp.eq.s32.totalorder %s27, 1
    %p360 = scmp.ne.s32.totalorder %s355, %s357
    %p361 = scmp.eq.s32.totalorder %s27, 0
    %p362 = por %p360, %p361
    %p363 = scmp.ne.s32.totalorder %s355, %s357
    %p364 = scmp.eq.s32.totalorder %s32, 1
    %p365 = por %p363, %p364
    %p366 = scmp.ne.s32.totalorder %s357, %s358
    %p367 = scmp.eq.s32.totalorder %s32, 0
    %p368 = por %p366, %p367
    %p369 = scmp.ne.s32.totalorder %s357, %s358
    %p370 = scmp.eq.s32.totalorder %s33, 1
    %p371 = por %p369, %p370
    %p373 = scmp.ne.s32.totalorder %s358, %s372
    %p374 = scmp.eq.s32.totalorder %s33, 0
    %p375 = por %p373, %p374
    %s377 = sadd.s32 %s376, 1
    %p380 = scmp.eq.s32.totalorder %s27, 1
    %p381 = scmp.ne.s32.totalorder %s376, %s378
    %p382 = scmp.eq.s32.totalorder %s27, 0
    %p383 = por %p381, %p382
    %p384 = scmp.ne.s32.totalorder %s376, %s378
    %p385 = scmp.eq.s32.totalorder %s32, 1
    %p386 = por %p384, %p385
    %p387 = scmp.ne.s32.totalorder %s378, %s379
    %p388 = scmp.eq.s32.totalorder %s32, 0
    %p389 = por %p387, %p388
    %p390 = scmp.ne.s32.totalorder %s378, %s379
    %p391 = scmp.eq.s32.totalorder %s33, 1
    %p392 = por %p390, %p391
    %p394 = scmp.ne.s32.totalorder %s379, %s393
    %p395 = scmp.eq.s32.totalorder %s33, 0
    %p396 = por %p394, %p395
    %s398 = sadd.s32 %s397, 1
    %p401 = scmp.eq.s32.totalorder %s27, 1
    %p402 = scmp.ne.s32.totalorder %s397, %s399
    %p403 = scmp.eq.s32.totalorder %s27, 0
    %p404 = por %p402, %p403
    %p405 = scmp.ne.s32.totalorder %s397, %s399
    %p406 = scmp.eq.s32.totalorder %s32, 1
    %p407 = por %p405, %p406
    %p408 = scmp.ne.s32.totalorder %s399, %s400
    %p409 = scmp.eq.s32.totalorder %s32, 0
    %p410 = por %p408, %p409
    %p411 = scmp.ne.s32.totalorder %s399, %s400
    %p412 = scmp.eq.s32.totalorder %s33, 1
    %p413 = por %p411, %p412
    %p415 = scmp.ne.s32.totalorder %s400, %s414
    %p416 = scmp.eq.s32.totalorder %s33, 0
    %p417 = por %p415, %p416
    %s419 = sadd.s32 %s418, 1
    %p422 = scmp.eq.s32.totalorder %s27, 1
    %p423 = scmp.ne.s32.totalorder %s418, %s420
    %p424 = scmp.eq.s32.totalorder %s27, 0
    %p425 = por %p423, %p424
    %p426 = scmp.ne.s32.totalorder %s418, %s420
    %p427 = scmp.eq.s32.totalorder %s32, 1
    %p428 = por %p426, %p427
    %p429 = scmp.ne.s32.totalorder %s420, %s421
    %p430 = scmp.eq.s32.totalorder %s32, 0
    %p431 = por %p429, %p430
    %p432 = scmp.ne.s32.totalorder %s420, %s421
    %p433 = scmp.eq.s32.totalorder %s33, 1
    %p434 = por %p432, %p433
    %p436 = scmp.ne.s32.totalorder %s421, %s435
    %p437 = scmp.eq.s32.totalorder %s33, 0
    %p438 = por %p436, %p437
    %s439 = ssub.s32 %s27, %s34
    %p440 = scmp.eq.s32.totalorder %s439, 0
    %s442 = sadd.s32 %s441, 1
    %s443 = scalar_select %p440, %s441, %s442
    %p446 = pneg %p440
    %p447 = scmp.eq.s32.totalorder %s27, 1
    %p448 = por %p446, %p447
    %p449 = scmp.ne.s32.totalorder %s441, %s444
    %p450 = scmp.eq.s32.totalorder %s27, 0
    %p451 = por %p449, %p450
    %p452 = scmp.ne.s32.totalorder %s441, %s444
    %p453 = scmp.eq.s32.totalorder %s32, 1
    %p454 = por %p452, %p453
    %p455 = scmp.ne.s32.totalorder %s444, %s445
    %p456 = scmp.eq.s32.totalorder %s32, 0
    %p457 = por %p455, %p456
    %p458 = scmp.ne.s32.totalorder %s444, %s445
    %p459 = scmp.eq.s32.totalorder %s33, 1
    %p460 = por %p458, %p459
    %p462 = scmp.ne.s32.totalorder %s445, %s461
    %p463 = scmp.eq.s32.totalorder %s33, 0
    %p464 = por %p462, %p463
    %p465 = scmp.le.s32.totalorder 1, %s27
    %p466 = scmp.lt.s32.totalorder %s27, 3
    %p467 = pnand %p465, %p466
    %p468 = pneg %p467
    // Predicated region
    $region9: #{tpu_custom_call.1} parent=5 // pred_check
      _
    $region10: #{tpu_custom_call.1} parent=5 // pred_check_branch
      %470 = sbr.rel (%p467) target = $region12
    $region11: #{tpu_custom_call.1} parent=5 // pred_region
      %s471 = ssub.s32 %s27, 1
      // Predicated region
      $region13: #{tpu_custom_call.1} parent=11 // pred_check
        %p472 = pneg %p74
      $region14: #{tpu_custom_call.1} parent=11 // pred_check_branch
        %474 = sbr.rel (%p472) target = $region16
      $region15: #{tpu_custom_call.1} parent=11 // pred_region
        _
      $region16: #{tpu_custom_call.1} parent=11 // pred_fallthru
        _
      // Predicated region
      $region17: #{tpu_custom_call.1} parent=11 // pred_check
        %p475 = pneg %p95
      $region18: #{tpu_custom_call.1} parent=11 // pred_check_branch
        %477 = sbr.rel (%p475) target = $region20
      $region19: #{tpu_custom_call.1} parent=11 // pred_region
        _
      $region20: #{tpu_custom_call.1} parent=11 // pred_fallthru
        _
      // Predicated region
      $region21: #{tpu_custom_call.1} parent=11 // pred_check
        %p478 = pneg %p116
      $region22: #{tpu_custom_call.1} parent=11 // pred_check_branch
        %480 = sbr.rel (%p478) target = $region24
      $region23: #{tpu_custom_call.1} parent=11 // pred_region
        _
      $region24: #{tpu_custom_call.1} parent=11 // pred_fallthru
        _
      // Predicated region
      $region25: #{tpu_custom_call.1} parent=11 // pred_check
        %p481 = pneg %p137
      $region26: #{tpu_custom_call.1} parent=11 // pred_check_branch
        %483 = sbr.rel (%p481) target = $region28
      $region27: #{tpu_custom_call.1} parent=11 // pred_region
        _
      $region28: #{tpu_custom_call.1} parent=11 // pred_fallthru
        _
      // Predicated region
      $region29: #{tpu_custom_call.1} parent=11 // pred_check
        %p484 = pneg %p158
      $region30: #{tpu_custom_call.1} parent=11 // pred_check_branch
        %486 = sbr.rel (%p484) target = $region32
      $region31: #{tpu_custom_call.1} parent=11 // pred_region
        _
      $region32: #{tpu_custom_call.1} parent=11 // pred_fallthru
        _
      // Predicated region
      $region33: #{tpu_custom_call.1} parent=11 // pred_check
        %p487 = pneg %p179
      $region34: #{tpu_custom_call.1} parent=11 // pred_check_branch
        %489 = sbr.rel (%p487) target = $region36
      $region35: #{tpu_custom_call.1} parent=11 // pred_region
        _
      $region36: #{tpu_custom_call.1} parent=11 // pred_fallthru
        _
      // Predicated region
      $region37: #{tpu_custom_call.1} parent=11 // pred_check
        %p490 = pneg %p200
      $region38: #{tpu_custom_call.1} parent=11 // pred_check_branch
        %492 = sbr.rel (%p490) target = $region40
      $region39: #{tpu_custom_call.1} parent=11 // pred_region
        _
      $region40: #{tpu_custom_call.1} parent=11 // pred_fallthru
        _
      // Predicated region
      $region41: #{tpu_custom_call.1} parent=11 // pred_check
        %p493 = pneg %p221
      $region42: #{tpu_custom_call.1} parent=11 // pred_check_branch
        %495 = sbr.rel (%p493) target = $region44
      $region43: #{tpu_custom_call.1} parent=11 // pred_region
        _
      $region44: #{tpu_custom_call.1} parent=11 // pred_fallthru
        _
      // Predicated region
      $region45: #{tpu_custom_call.1} parent=11 // pred_check
        %p496 = pneg %p242
      $region46: #{tpu_custom_call.1} parent=11 // pred_check_branch
        %498 = sbr.rel (%p496) target = $region48
      $region47: #{tpu_custom_call.1} parent=11 // pred_region
        _
      $region48: #{tpu_custom_call.1} parent=11 // pred_fallthru
        _
      // Predicated region
      $region49: #{tpu_custom_call.1} parent=11 // pred_check
        %p499 = pneg %p263
      $region50: #{tpu_custom_call.1} parent=11 // pred_check_branch
        %501 = sbr.rel (%p499) target = $region52
      $region51: #{tpu_custom_call.1} parent=11 // pred_region
        _
      $region52: #{tpu_custom_call.1} parent=11 // pred_fallthru
        _
      // Predicated region
      $region53: #{tpu_custom_call.1} parent=11 // pred_check
        %p502 = pneg %p284
      $region54: #{tpu_custom_call.1} parent=11 // pred_check_branch
        %504 = sbr.rel (%p502) target = $region56
      $region55: #{tpu_custom_call.1} parent=11 // pred_region
        _
      $region56: #{tpu_custom_call.1} parent=11 // pred_fallthru
        _
      // Predicated region
      $region57: #{tpu_custom_call.1} parent=11 // pred_check
        %p505 = pneg %p305
      $region58: #{tpu_custom_call.1} parent=11 // pred_check_branch
        %507 = sbr.rel (%p505) target = $region60
      $region59: #{tpu_custom_call.1} parent=11 // pred_region
        _
      $region60: #{tpu_custom_call.1} parent=11 // pred_fallthru
        _
      // Predicated region
      $region61: #{tpu_custom_call.1} parent=11 // pred_check
        %p508 = pneg %p326
      $region62: #{tpu_custom_call.1} parent=11 // pred_check_branch
        %510 = sbr.rel (%p508) target = $region64
      $region63: #{tpu_custom_call.1} parent=11 // pred_region
        _
      $region64: #{tpu_custom_call.1} parent=11 // pred_fallthru
        _
      // Predicated region
      $region65: #{tpu_custom_call.1} parent=11 // pred_check
        %p511 = pneg %p347
      $region66: #{tpu_custom_call.1} parent=11 // pred_check_branch
        %513 = sbr.rel (%p511) target = $region68
      $region67: #{tpu_custom_call.1} parent=11 // pred_region
        _
      $region68: #{tpu_custom_call.1} parent=11 // pred_fallthru
        _
      // Predicated region
      $region69: #{tpu_custom_call.1} parent=11 // pred_check
        %p514 = pneg %p368
      $region70: #{tpu_custom_call.1} parent=11 // pred_check_branch
        %516 = sbr.rel (%p514) target = $region72
      $region71: #{tpu_custom_call.1} parent=11 // pred_region
        _
      $region72: #{tpu_custom_call.1} parent=11 // pred_fallthru
        _
      // Predicated region
      $region73: #{tpu_custom_call.1} parent=11 // pred_check
        %p517 = pneg %p389
      $region74: #{tpu_custom_call.1} parent=11 // pred_check_branch
        %519 = sbr.rel (%p517) target = $region76
      $region75: #{tpu_custom_call.1} parent=11 // pred_region
        _
      $region76: #{tpu_custom_call.1} parent=11 // pred_fallthru
        _
      // Predicated region
      $region77: #{tpu_custom_call.1} parent=11 // pred_check
        %p520 = pneg %p410
      $region78: #{tpu_custom_call.1} parent=11 // pred_check_branch
        %522 = sbr.rel (%p520) target = $region80
      $region79: #{tpu_custom_call.1} parent=11 // pred_region
        _
      $region80: #{tpu_custom_call.1} parent=11 // pred_fallthru
        _
      // Predicated region
      $region81: #{tpu_custom_call.1} parent=11 // pred_check
        %p523 = pneg %p431
      $region82: #{tpu_custom_call.1} parent=11 // pred_check_branch
        %525 = sbr.rel (%p523) target = $region84
      $region83: #{tpu_custom_call.1} parent=11 // pred_region
        _
      $region84: #{tpu_custom_call.1} parent=11 // pred_fallthru
        _
    $region12: #{tpu_custom_call.1} parent=5 // pred_fallthru
      _
    %p526 = scmp.lt.s32.totalorder %s27, 2
    // Predicated region
    $region85: #{tpu_custom_call.1} parent=5 // pred_check
      %p527 = pneg %p526
    $region86: #{tpu_custom_call.1} parent=5 // pred_check_branch
      %529 = sbr.rel (%p527) target = $region88
    $region87: #{tpu_custom_call.1} parent=5 // pred_region
      // Predicated region
      $region89: #{tpu_custom_call.1} parent=87 // pred_check
        %p530 = pneg %p47
      $region90: #{tpu_custom_call.1} parent=87 // pred_check_branch
        %532 = sbr.rel (%p530) target = $region92
      $region91: #{tpu_custom_call.1} parent=87 // pred_region
        %s533 = smul.u32 16, %s27
        %p534 = scmp.lt.s32.totalorder %s533, 31
        %s535 = scalar_select %p534, %s533, 31
        %s536 = smul.addr %s535, 8
        %s537 = scalar_lea.vmem %s0, %s536
        %s538 = smul.u32 16, %s27
      $region92: #{tpu_custom_call.1} parent=87 // pred_fallthru
        _
    $region88: #{tpu_custom_call.1} parent=5 // pred_fallthru
      _
    %p539 = scmp.le.s32.totalorder 1, %s27
    %p540 = scmp.lt.s32.totalorder %s27, 3
    %p541 = pnand %p539, %p540
    %p542 = pneg %p541
    // Predicated region
    $region93: #{tpu_custom_call.1} parent=5 // pred_check
      _
    $region94: #{tpu_custom_call.1} parent=5 // pred_check_branch
      %544 = sbr.rel (%p541) target = $region96
    $region95: #{tpu_custom_call.1} parent=5 // pred_region
      %s545 = ssub.s32 %s27, 1
      %s546 = smul.u32 16, %s32
      %p547 = scmp.lt.s32.totalorder %s546, 31
      %s548 = scalar_select %p547, %s546, 31
      %s549 = smul.addr %s548, 8
      %s550 = scalar_lea.vmem %s0, %s549
      %p551 = pneg %p53
      %p552 = pneg %p50
      %p553 = pneg %p74
      %p554 = pneg %p71
      %p555 = pneg %p95
      %p556 = pneg %p92
      %p557 = pneg %p116
      %p558 = pneg %p113
      %p559 = pneg %p137
      %p560 = pneg %p134
      %p561 = pneg %p158
      %p562 = pneg %p155
      %p563 = pneg %p179
      %p564 = pneg %p176
      %p565 = pneg %p200
      %p566 = pneg %p197
      %p567 = pneg %p221
      %p568 = pneg %p218
      %p569 = pneg %p242
      %p570 = pneg %p239
      %p571 = pneg %p263
      %p572 = pneg %p260
      %p573 = pneg %p284
      %p574 = pneg %p281
      %p575 = pneg %p305
      %p576 = pneg %p302
      %p577 = pneg %p326
      %p578 = pneg %p323
      %p579 = pneg %p347
      %p580 = pneg %p344
      %p581 = pneg %p368
      %p582 = pneg %p365
      %p583 = pneg %p389
      %p584 = pneg %p386
      %p585 = pneg %p410
      %p586 = pneg %p407
      %p587 = pneg %p431
      %p588 = pneg %p428
      %p589 = pneg %p457
      %p590 = pneg %p454
      %s591 = smul.u32 16, %s32
      %p592 = scmp.lt.s32.totalorder %s591, 31
      %s593 = scalar_select %p592, %s591, 31
      %s594 = smul.addr %s593, 8
      %s595 = scalar_lea.vmem %s19, %s594
      %s596 = smul.u32 16, %s32
      %p597 = scmp.lt.s32.totalorder %s596, 31
      %s598 = scalar_select %p597, %s596, 31
      %s599 = smul.addr %s598, 8
      %s600 = scalar_lea.vmem %s0, %s599
      %s601 = smul.u32 16, %s32
      %s602 = smul.u32 16, %s32
      %p603 = scmp.lt.s32.totalorder %s602, 31
      %s604 = scalar_select %p603, %s602, 31
      %s605 = smul.addr %s604, 8
      %s606 = scalar_lea.vmem %s19, %s605
      %s607 = smul.u32 16, %s32
      %v609 = vld [vmem:[%s600] sm:$0xff]
      %v610 = vld [vmem:[%s600 + $0x8] sm:$0xff]
      %v611 = vld [vmem:[%s600 + $0x10] sm:$0xff]
      %v612 = vld [vmem:[%s600 + $0x18] sm:$0xff]
      %v613 = vld [vmem:[%s600 + $0x20] sm:$0xff]
      %v614 = vld [vmem:[%s600 + $0x28] sm:$0xff]
      %v615 = vld [vmem:[%s600 + $0x30] sm:$0xff]
      %v616 = vld [vmem:[%s600 + $0x38] sm:$0xff]
      %v617 = vld [vmem:[%s600 + $0x40] sm:$0xff]
      %v618 = vld [vmem:[%s600 + $0x48] sm:$0xff]
      %v619 = vld [vmem:[%s600 + $0x50] sm:$0xff]
      %v620 = vld [vmem:[%s600 + $0x58] sm:$0xff]
      %v621 = vld [vmem:[%s600 + $0x60] sm:$0xff]
      %v622 = vld [vmem:[%s600 + $0x68] sm:$0xff]
      %v623 = vld [vmem:[%s600 + $0x70] sm:$0xff]
      %v624 = vld [vmem:[%s600 + $0x78] sm:$0xff]
      %v625 = vld [vmem:[%s1] sm:$0x1]
      %v627 = vlaneseq
      %v628 = vshrl.u32 %v627, 7
      %v629 = vsub.s32 0, %v628
      %v630 = vrot.slane %v625, %v629
      %v632 = vsub.f32 %v609, %v630
      %v633 = vsub.f32 %v610, %v630
      %v634 = vsub.f32 %v611, %v630
      %v635 = vsub.f32 %v612, %v630
      %v636 = vsub.f32 %v613, %v630
      %v637 = vsub.f32 %v614, %v630
      %v638 = vsub.f32 %v615, %v630
      %v639 = vsub.f32 %v616, %v630
      %v640 = vsub.f32 %v617, %v630
      %v641 = vsub.f32 %v618, %v630
      %v642 = vsub.f32 %v619, %v630
      %v643 = vsub.f32 %v620, %v630
      %v644 = vsub.f32 %v621, %v630
      %v645 = vsub.f32 %v622, %v630
      %v646 = vsub.f32 %v623, %v630
      %v647 = vsub.f32 %v624, %v630
      %v648 = vld [vmem:[%s2] sm:$0x1]
      %v650 = vlaneseq
      %v651 = vshrl.u32 %v650, 7
      %v652 = vsub.s32 0, %v651
      %v653 = vrot.slane %v648, %v652
      %v655 = vmul.f32 %v632, %v653
      %v656 = vmul.f32 %v633, %v653
      %v657 = vmul.f32 %v634, %v653
      %v658 = vmul.f32 %v635, %v653
      %v659 = vmul.f32 %v636, %v653
      %v660 = vmul.f32 %v637, %v653
      %v661 = vmul.f32 %v638, %v653
      %v662 = vmul.f32 %v639, %v653
      %v663 = vmul.f32 %v640, %v653
      %v664 = vmul.f32 %v641, %v653
      %v665 = vmul.f32 %v642, %v653
      %v666 = vmul.f32 %v643, %v653
      %v667 = vmul.f32 %v644, %v653
      %v668 = vmul.f32 %v645, %v653
      %v669 = vmul.f32 %v646, %v653
      %v670 = vmul.f32 %v647, %v653
      %v671 = vld [vmem:[%s3] sm:$0xf]
      %v672 = vld [vmem:[%s3 + $0x4] sm:$0xf]
      %v673 = vld [vmem:[%s4] sm:$0x1]
      %v674 = vpack.c.bf16 %v656, %v655
      %v675 = vpack.c.bf16 %v658, %v657
      %v676 = vpack.c.bf16 %v660, %v659
      %v677 = vpack.c.bf16 %v662, %v661
      %v678 = vpack.c.bf16 %v664, %v663
      %v679 = vpack.c.bf16 %v666, %v665
      %v680 = vpack.c.bf16 %v668, %v667
      %v681 = vpack.c.bf16 %v670, %v669
      %v683 = vlaneseq
      %v684 = vshrl.u32 %v683, 7
      %v685 = vsub.s32 0, %v684
      %v686 = vrot.slane %v673, %v685
      %v690 = vunpack.c.l.b16 %v671
      %v691 = vunpack.c.l.b16 %v672
      %v692 = vpack.c.b16 %v691, %v690
      %vm694 = vcmask 130048
      %v696 = vsel %vm694, %v674, 0
      %v699 = vsel %vm694, %v675, 0
      %v702 = vsel %vm694, %v676, 0
      %v705 = vsel %vm694, %v677, 0
      %v708 = vsel %vm694, %v678, 0
      %v711 = vsel %vm694, %v679, 0
      %v714 = vsel %vm694, %v680, 0
      %v717 = vsel %vm694, %v681, 0
      %719 = vmatprep.subr.bf16.mxu0 0
      %720 = vmatpush1.bf16.msra.mxu0 0
      %721 = vmatprep.subr.bf16.mxu0 0
      %722 = vmatpush1.bf16.msra.mxu0 0
      %723 = vmatprep.subr.bf16.mxu0 0
      %724 = vmatpush1.bf16.msra.mxu0 0
      %725 = vmatprep.subr.bf16.mxu0 0
      %726 = vmatpush1.bf16.msra.mxu0 0
      %727 = vmatprep.subr.bf16.mxu0 0
      %728 = vmatpush1.bf16.msra.mxu0 0
      %729 = vmatprep.subr.bf16.mxu0 0
      %730 = vmatpush1.bf16.msra.mxu0 0
      %731 = vmatprep.subr.bf16.mxu0 0
      %732 = vmatpush1.bf16.msra.mxu0 0
      %733 = vmatprep.subr.bf16.mxu0 0
      %734 = vmatpush1.bf16.msra.mxu0 %v692
      %735 = vmatprep.subr.bf16.mxu0 0
      %736 = vmatpush2.bf16.msra.mxu0 0
      %737 = vmatprep.subr.bf16.mxu0 0
      %738 = vmatpush2.bf16.msra.mxu0 0
      %739 = vmatprep.subr.bf16.mxu0 0
      %740 = vmatpush2.bf16.msra.mxu0 0
      %741 = vmatprep.subr.bf16.mxu0 0
      %742 = vmatpush2.bf16.msra.mxu0 0
      %743 = vmatprep.subr.bf16.mxu0 0
      %744 = vmatpush2.bf16.msra.mxu0 0
      %745 = vmatprep.subr.bf16.mxu0 0
      %746 = vmatpush2.bf16.msra.mxu0 0
      %747 = vmatprep.subr.bf16.mxu0 0
      %748 = vmatpush2.bf16.msra.mxu0 0
      %749 = vmatprep.subr.bf16.mxu0 0
      %750 = vmatpush2.bf16.msra.mxu0 0
      %751 = vmatprep.mubr.bf16.mxu0 0
      %752 = vmatmul.mubr.bf16.gmra.mxu0 %v696
      %v753 = vpop.f32.mrf.mxu0
      %v754 = vadd.f32 %v686, %v753
      %v755 = vpop.f32.mrf.mxu0
      %v756 = vpop.f32.mrf.mxu0
      %v757 = vadd.f32 %v686, %v756
      %v758 = vpop.f32.mrf.mxu0
      %759 = vmatprep.mubr.bf16.mxu0 0
      %760 = vmatmul.mubr.bf16.gmra.mxu0 %v699
      %v761 = vpop.f32.mrf.mxu0
      %v762 = vadd.f32 %v686, %v761
      %v763 = vpop.f32.mrf.mxu0
      %v764 = vpop.f32.mrf.mxu0
      %v765 = vadd.f32 %v686, %v764
      %v766 = vpop.f32.mrf.mxu0
      %767 = vmatprep.mubr.bf16.mxu0 0
      %768 = vmatmul.mubr.bf16.gmra.mxu0 %v702
      %v769 = vpop.f32.mrf.mxu0
      %v770 = vadd.f32 %v686, %v769
      %v771 = vpop.f32.mrf.mxu0
      %v772 = vpop.f32.mrf.mxu0
      %v773 = vadd.f32 %v686, %v772
      %v774 = vpop.f32.mrf.mxu0
      %775 = vmatprep.mubr.bf16.mxu0 0
      %776 = vmatmul.mubr.bf16.gmra.mxu0 %v705
      %v777 = vpop.f32.mrf.mxu0
      %v778 = vadd.f32 %v686, %v777
      %v779 = vpop.f32.mrf.mxu0
      %v780 = vpop.f32.mrf.mxu0
      %v781 = vadd.f32 %v686, %v780
      %v782 = vpop.f32.mrf.mxu0
      %783 = vmatprep.mubr.bf16.mxu0 0
      %784 = vmatmul.mubr.bf16.gmra.mxu0 %v708
      %v785 = vpop.f32.mrf.mxu0
      %v786 = vadd.f32 %v686, %v785
      %v787 = vpop.f32.mrf.mxu0
      %v788 = vpop.f32.mrf.mxu0
      %v789 = vadd.f32 %v686, %v788
      %v790 = vpop.f32.mrf.mxu0
      %791 = vmatprep.mubr.bf16.mxu0 0
      %792 = vmatmul.mubr.bf16.gmra.mxu0 %v711
      %v793 = vpop.f32.mrf.mxu0
      %v794 = vadd.f32 %v686, %v793
      %v795 = vpop.f32.mrf.mxu0
      %v796 = vpop.f32.mrf.mxu0
      %v797 = vadd.f32 %v686, %v796
      %v798 = vpop.f32.mrf.mxu0
      %799 = vmatprep.mubr.bf16.mxu0 0
      %800 = vmatmul.mubr.bf16.gmra.mxu0 %v714
      %v801 = vpop.f32.mrf.mxu0
      %v802 = vadd.f32 %v686, %v801
      %v803 = vpop.f32.mrf.mxu0
      %v804 = vpop.f32.mrf.mxu0
      %v805 = vadd.f32 %v686, %v804
      %v806 = vpop.f32.mrf.mxu0
      %807 = vmatprep.mubr.bf16.mxu0 0
      %808 = vmatmul.mubr.bf16.gmra.mxu0 %v717
      %v809 = vpop.f32.mrf.mxu0
      %v810 = vadd.f32 %v686, %v809
      %v811 = vpop.f32.mrf.mxu0
      %v812 = vpop.f32.mrf.mxu0
      %v813 = vadd.f32 %v686, %v812
      %v814 = vpop.f32.mrf.mxu0
      %815 = vdwg.mxu0
      %v816 = vmax.f32 %v754, 0.0
      %v817 = vmax.f32 %v757, 0.0
      %v818 = vmax.f32 %v762, 0.0
      %v819 = vmax.f32 %v765, 0.0
      %v820 = vmax.f32 %v770, 0.0
      %v821 = vmax.f32 %v773, 0.0
      %v822 = vmax.f32 %v778, 0.0
      %v823 = vmax.f32 %v781, 0.0
      %v824 = vmax.f32 %v786, 0.0
      %v825 = vmax.f32 %v789, 0.0
      %v826 = vmax.f32 %v794, 0.0
      %v827 = vmax.f32 %v797, 0.0
      %v828 = vmax.f32 %v802, 0.0
      %v829 = vmax.f32 %v805, 0.0
      %v830 = vmax.f32 %v810, 0.0
      %v831 = vmax.f32 %v813, 0.0
      %v832 = vld [vmem:[%s5] sm:$0xf]
      %v833 = vld [vmem:[%s5 + $0x4] sm:$0xf]
      %v834 = vld [vmem:[%s5 + $0x8] sm:$0xf]
      %v835 = vld [vmem:[%s5 + $0xc] sm:$0xf]
      %v836 = vld [vmem:[%s6] sm:$0x1]
      %v837 = vpack.c.bf16 %v817, %v816
      %v838 = vpack.c.bf16 %v819, %v818
      %v839 = vpack.c.bf16 %v821, %v820
      %v840 = vpack.c.bf16 %v823, %v822
      %v841 = vpack.c.bf16 %v825, %v824
      %v842 = vpack.c.bf16 %v827, %v826
      %v843 = vpack.c.bf16 %v829, %v828
      %v844 = vpack.c.bf16 %v831, %v830
      %v846 = vlaneseq
      %v847 = vshrl.u32 %v846, 7
      %v848 = vsub.s32 0, %v847
      %v849 = vrot.slane %v836, %v848
      %v855 = vunpack.c.l.b16 %v832
      %v856 = vunpack.c.l.b16 %v833
      %v857 = vunpack.c.l.b16 %v834
      %v858 = vunpack.c.l.b16 %v835
      %v859 = vpack.c.b16 %v856, %v855
      %v860 = vpack.c.b16 %v858, %v857
      %vm863 = vcmask 261120
      %v865 = vsel %vm863, %v837, 0
      %v868 = vsel %vm863, %v838, 0
      %v871 = vsel %vm863, %v839, 0
      %v874 = vsel %vm863, %v840, 0
      %v877 = vsel %vm863, %v841, 0
      %v880 = vsel %vm863, %v842, 0
      %v883 = vsel %vm863, %v843, 0
      %v886 = vsel %vm863, %v844, 0
      %888 = vmatprep.subr.bf16.mxu0 0
      %889 = vmatpush1.bf16.msra.mxu0 0
      %890 = vmatprep.subr.bf16.mxu0 0
      %891 = vmatpush1.bf16.msra.mxu0 0
      %892 = vmatprep.subr.bf16.mxu0 0
      %893 = vmatpush1.bf16.msra.mxu0 0
      %894 = vmatprep.subr.bf16.mxu0 0
      %895 = vmatpush1.bf16.msra.mxu0 0
      %896 = vmatprep.subr.bf16.mxu0 0
      %897 = vmatpush1.bf16.msra.mxu0 0
      %898 = vmatprep.subr.bf16.mxu0 0
      %899 = vmatpush1.bf16.msra.mxu0 0
      %900 = vmatprep.subr.bf16.mxu0 0
      %901 = vmatpush1.bf16.msra.mxu0 %v860
      %902 = vmatprep.subr.bf16.mxu0 0
      %903 = vmatpush1.bf16.msra.mxu0 %v859
      %904 = vmatprep.subr.bf16.mxu0 0
      %905 = vmatpush2.bf16.msra.mxu0 0
      %906 = vmatprep.subr.bf16.mxu0 0
      %907 = vmatpush2.bf16.msra.mxu0 0
      %908 = vmatprep.subr.bf16.mxu0 0
      %909 = vmatpush2.bf16.msra.mxu0 0
      %910 = vmatprep.subr.bf16.mxu0 0
      %911 = vmatpush2.bf16.msra.mxu0 0
      %912 = vmatprep.subr.bf16.mxu0 0
      %913 = vmatpush2.bf16.msra.mxu0 0
      %914 = vmatprep.subr.bf16.mxu0 0
      %915 = vmatpush2.bf16.msra.mxu0 0
      %916 = vmatprep.subr.bf16.mxu0 0
      %917 = vmatpush2.bf16.msra.mxu0 0
      %918 = vmatprep.subr.bf16.mxu0 0
      %919 = vmatpush2.bf16.msra.mxu0 0
      %920 = vmatprep.mubr.bf16.mxu0 0
      %921 = vmatmul.mubr.bf16.gmra.mxu0 %v865
      %v922 = vpop.f32.mrf.mxu0
      %v923 = vadd.f32 %v849, %v922
      %v924 = vpop.f32.mrf.mxu0
      %v925 = vpop.f32.mrf.mxu0
      %v926 = vadd.f32 %v849, %v925
      %v927 = vpop.f32.mrf.mxu0
      %928 = vmatprep.mubr.bf16.mxu0 0
      %929 = vmatmul.mubr.bf16.gmra.mxu0 %v868
      %v930 = vpop.f32.mrf.mxu0
      %v931 = vadd.f32 %v849, %v930
      %v932 = vpop.f32.mrf.mxu0
      %v933 = vpop.f32.mrf.mxu0
      %v934 = vadd.f32 %v849, %v933
      %v935 = vpop.f32.mrf.mxu0
      %936 = vmatprep.mubr.bf16.mxu0 0
      %937 = vmatmul.mubr.bf16.gmra.mxu0 %v871
      %v938 = vpop.f32.mrf.mxu0
      %v939 = vadd.f32 %v849, %v938
      %v940 = vpop.f32.mrf.mxu0
      %v941 = vpop.f32.mrf.mxu0
      %v942 = vadd.f32 %v849, %v941
      %v943 = vpop.f32.mrf.mxu0
      %944 = vmatprep.mubr.bf16.mxu0 0
      %945 = vmatmul.mubr.bf16.gmra.mxu0 %v874
      %v946 = vpop.f32.mrf.mxu0
      %v947 = vadd.f32 %v849, %v946
      %v948 = vpop.f32.mrf.mxu0
      %v949 = vpop.f32.mrf.mxu0
      %v950 = vadd.f32 %v849, %v949
      %v951 = vpop.f32.mrf.mxu0
      %952 = vmatprep.mubr.bf16.mxu0 0
      %953 = vmatmul.mubr.bf16.gmra.mxu0 %v877
      %v954 = vpop.f32.mrf.mxu0
      %v955 = vadd.f32 %v849, %v954
      %v956 = vpop.f32.mrf.mxu0
      %v957 = vpop.f32.mrf.mxu0
      %v958 = vadd.f32 %v849, %v957
      %v959 = vpop.f32.mrf.mxu0
      %960 = vmatprep.mubr.bf16.mxu0 0
      %961 = vmatmul.mubr.bf16.gmra.mxu0 %v880
      %v962 = vpop.f32.mrf.mxu0
      %v963 = vadd.f32 %v849, %v962
      %v964 = vpop.f32.mrf.mxu0
      %v965 = vpop.f32.mrf.mxu0
      %v966 = vadd.f32 %v849, %v965
      %v967 = vpop.f32.mrf.mxu0
      %968 = vmatprep.mubr.bf16.mxu0 0
      %969 = vmatmul.mubr.bf16.gmra.mxu0 %v883
      %v970 = vpop.f32.mrf.mxu0
      %v971 = vadd.f32 %v849, %v970
      %v972 = vpop.f32.mrf.mxu0
      %v973 = vpop.f32.mrf.mxu0
      %v974 = vadd.f32 %v849, %v973
      %v975 = vpop.f32.mrf.mxu0
      %976 = vmatprep.mubr.bf16.mxu0 0
      %977 = vmatmul.mubr.bf16.gmra.mxu0 %v886
      %v978 = vpop.f32.mrf.mxu0
      %v979 = vadd.f32 %v849, %v978
      %v980 = vpop.f32.mrf.mxu0
      %v981 = vpop.f32.mrf.mxu0
      %v982 = vadd.f32 %v849, %v981
      %v983 = vpop.f32.mrf.mxu0
      %984 = vdwg.mxu0
      %v985 = vmax.f32 %v923, 0.0
      %v986 = vmax.f32 %v926, 0.0
      %v987 = vmax.f32 %v931, 0.0
      %v988 = vmax.f32 %v934, 0.0
      %v989 = vmax.f32 %v939, 0.0
      %v990 = vmax.f32 %v942, 0.0
      %v991 = vmax.f32 %v947, 0.0
      %v992 = vmax.f32 %v950, 0.0
      %v993 = vmax.f32 %v955, 0.0
      %v994 = vmax.f32 %v958, 0.0
      %v995 = vmax.f32 %v963, 0.0
      %v996 = vmax.f32 %v966, 0.0
      %v997 = vmax.f32 %v971, 0.0
      %v998 = vmax.f32 %v974, 0.0
      %v999 = vmax.f32 %v979, 0.0
      %v1000 = vmax.f32 %v982, 0.0
      %v1001 = vld [vmem:[%s7] sm:$0xf]
      %v1002 = vld [vmem:[%s7 + $0x4] sm:$0xf]
      %v1003 = vld [vmem:[%s7 + $0x8] sm:$0xf]
      %v1004 = vld [vmem:[%s7 + $0xc] sm:$0xf]
      %v1005 = vld [vmem:[%s7 + $0x10] sm:$0xf]
      %v1006 = vld [vmem:[%s7 + $0x14] sm:$0xf]
      %v1007 = vld [vmem:[%s7 + $0x18] sm:$0xf]
      %v1008 = vld [vmem:[%s7 + $0x1c] sm:$0xf]
      %v1009 = vld [vmem:[%s8] sm:$0x1]
      %v1010 = vpack.c.bf16 %v986, %v985
      %v1011 = vpack.c.bf16 %v988, %v987
      %v1012 = vpack.c.bf16 %v990, %v989
      %v1013 = vpack.c.bf16 %v992, %v991
      %v1014 = vpack.c.bf16 %v994, %v993
      %v1015 = vpack.c.bf16 %v996, %v995
      %v1016 = vpack.c.bf16 %v998, %v997
      %v1017 = vpack.c.bf16 %v1000, %v999
      %v1019 = vlaneseq
      %v1020 = vshrl.u32 %v1019, 7
      %v1021 = vsub.s32 0, %v1020
      %v1022 = vrot.slane %v1009, %v1021
      %v1032 = vunpack.c.l.b16 %v1001
      %v1033 = vunpack.c.l.b16 %v1002
      %v1034 = vunpack.c.l.b16 %v1003
      %v1035 = vunpack.c.l.b16 %v1004
      %v1036 = vunpack.c.l.b16 %v1005
      %v1037 = vunpack.c.l.b16 %v1006
      %v1038 = vunpack.c.l.b16 %v1007
      %v1039 = vunpack.c.l.b16 %v1008
      %v1040 = vpack.c.b16 %v1033, %v1032
      %v1041 = vpack.c.b16 %v1035, %v1034
      %v1042 = vpack.c.b16 %v1037, %v1036
      %v1043 = vpack.c.b16 %v1039, %v1038
      %vm1048 = vcmask 523264
      %v1050 = vsel %vm1048, %v1010, 0
      %v1053 = vsel %vm1048, %v1011, 0
      %v1056 = vsel %vm1048, %v1012, 0
      %v1059 = vsel %vm1048, %v1013, 0
      %v1062 = vsel %vm1048, %v1014, 0
      %v1065 = vsel %vm1048, %v1015, 0
      %v1068 = vsel %vm1048, %v1016, 0
      %v1071 = vsel %vm1048, %v1017, 0
      %1073 = vmatprep.subr.bf16.mxu0 0
      %1074 = vmatpush1.bf16.msra.mxu0 0
      %1075 = vmatprep.subr.bf16.mxu0 0
      %1076 = vmatpush1.bf16.msra.mxu0 0
      %1077 = vmatprep.subr.bf16.mxu0 0
      %1078 = vmatpush1.bf16.msra.mxu0 0
      %1079 = vmatprep.subr.bf16.mxu0 0
      %1080 = vmatpush1.bf16.msra.mxu0 0
      %1081 = vmatprep.subr.bf16.mxu0 0
      %1082 = vmatpush1.bf16.msra.mxu0 %v1043
      %1083 = vmatprep.subr.bf16.mxu0 0
      %1084 = vmatpush1.bf16.msra.mxu0 %v1042
      %1085 = vmatprep.subr.bf16.mxu0 0
      %1086 = vmatpush1.bf16.msra.mxu0 %v1041
      %1087 = vmatprep.subr.bf16.mxu0 0
      %1088 = vmatpush1.bf16.msra.mxu0 %v1040
      %1089 = vmatprep.subr.bf16.mxu0 0
      %1090 = vmatpush2.bf16.msra.mxu0 0
      %1091 = vmatprep.subr.bf16.mxu0 0
      %1092 = vmatpush2.bf16.msra.mxu0 0
      %1093 = vmatprep.subr.bf16.mxu0 0
      %1094 = vmatpush2.bf16.msra.mxu0 0
      %1095 = vmatprep.subr.bf16.mxu0 0
      %1096 = vmatpush2.bf16.msra.mxu0 0
      %1097 = vmatprep.subr.bf16.mxu0 0
      %1098 = vmatpush2.bf16.msra.mxu0 0
      %1099 = vmatprep.subr.bf16.mxu0 0
      %1100 = vmatpush2.bf16.msra.mxu0 0
      %1101 = vmatprep.subr.bf16.mxu0 0
      %1102 = vmatpush2.bf16.msra.mxu0 0
      %1103 = vmatprep.subr.bf16.mxu0 0
      %1104 = vmatpush2.bf16.msra.mxu0 0
      %1105 = vmatprep.mubr.bf16.mxu0 0
      %1106 = vmatmul.mubr.bf16.gmra.mxu0 %v1050
      %v1107 = vpop.f32.mrf.mxu0
      %v1108 = vadd.f32 %v1022, %v1107
      %v1109 = vpop.f32.mrf.mxu0
      %v1110 = vpop.f32.mrf.mxu0
      %v1111 = vadd.f32 %v1022, %v1110
      %v1112 = vpop.f32.mrf.mxu0
      %1113 = vmatprep.mubr.bf16.mxu0 0
      %1114 = vmatmul.mubr.bf16.gmra.mxu0 %v1053
      %v1115 = vpop.f32.mrf.mxu0
      %v1116 = vadd.f32 %v1022, %v1115
      %v1117 = vpop.f32.mrf.mxu0
      %v1118 = vpop.f32.mrf.mxu0
      %v1119 = vadd.f32 %v1022, %v1118
      %v1120 = vpop.f32.mrf.mxu0
      %1121 = vmatprep.mubr.bf16.mxu0 0
      %1122 = vmatmul.mubr.bf16.gmra.mxu0 %v1056
      %v1123 = vpop.f32.mrf.mxu0
      %v1124 = vadd.f32 %v1022, %v1123
      %v1125 = vpop.f32.mrf.mxu0
      %v1126 = vpop.f32.mrf.mxu0
      %v1127 = vadd.f32 %v1022, %v1126
      %v1128 = vpop.f32.mrf.mxu0
      %1129 = vmatprep.mubr.bf16.mxu0 0
      %1130 = vmatmul.mubr.bf16.gmra.mxu0 %v1059
      %v1131 = vpop.f32.mrf.mxu0
      %v1132 = vadd.f32 %v1022, %v1131
      %v1133 = vpop.f32.mrf.mxu0
      %v1134 = vpop.f32.mrf.mxu0
      %v1135 = vadd.f32 %v1022, %v1134
      %v1136 = vpop.f32.mrf.mxu0
      %1137 = vmatprep.mubr.bf16.mxu0 0
      %1138 = vmatmul.mubr.bf16.gmra.mxu0 %v1062
      %v1139 = vpop.f32.mrf.mxu0
      %v1140 = vadd.f32 %v1022, %v1139
      %v1141 = vpop.f32.mrf.mxu0
      %v1142 = vpop.f32.mrf.mxu0
      %v1143 = vadd.f32 %v1022, %v1142
      %v1144 = vpop.f32.mrf.mxu0
      %1145 = vmatprep.mubr.bf16.mxu0 0
      %1146 = vmatmul.mubr.bf16.gmra.mxu0 %v1065
      %v1147 = vpop.f32.mrf.mxu0
      %v1148 = vadd.f32 %v1022, %v1147
      %v1149 = vpop.f32.mrf.mxu0
      %v1150 = vpop.f32.mrf.mxu0
      %v1151 = vadd.f32 %v1022, %v1150
      %v1152 = vpop.f32.mrf.mxu0
      %1153 = vmatprep.mubr.bf16.mxu0 0
      %1154 = vmatmul.mubr.bf16.gmra.mxu0 %v1068
      %v1155 = vpop.f32.mrf.mxu0
      %v1156 = vadd.f32 %v1022, %v1155
      %v1157 = vpop.f32.mrf.mxu0
      %v1158 = vpop.f32.mrf.mxu0
      %v1159 = vadd.f32 %v1022, %v1158
      %v1160 = vpop.f32.mrf.mxu0
      %1161 = vmatprep.mubr.bf16.mxu0 0
      %1162 = vmatmul.mubr.bf16.gmra.mxu0 %v1071
      %v1163 = vpop.f32.mrf.mxu0
      %v1164 = vadd.f32 %v1022, %v1163
      %v1165 = vpop.f32.mrf.mxu0
      %v1166 = vpop.f32.mrf.mxu0
      %v1167 = vadd.f32 %v1022, %v1166
      %v1168 = vpop.f32.mrf.mxu0
      %1169 = vdwg.mxu0
      %v1170 = vmax.f32 %v1108, 0.0
      %v1171 = vmax.f32 %v1111, 0.0
      %v1172 = vmax.f32 %v1116, 0.0
      %v1173 = vmax.f32 %v1119, 0.0
      %v1174 = vmax.f32 %v1124, 0.0
      %v1175 = vmax.f32 %v1127, 0.0
      %v1176 = vmax.f32 %v1132, 0.0
      %v1177 = vmax.f32 %v1135, 0.0
      %v1178 = vmax.f32 %v1140, 0.0
      %v1179 = vmax.f32 %v1143, 0.0
      %v1180 = vmax.f32 %v1148, 0.0
      %v1181 = vmax.f32 %v1151, 0.0
      %v1182 = vmax.f32 %v1156, 0.0
      %v1183 = vmax.f32 %v1159, 0.0
      %v1184 = vmax.f32 %v1164, 0.0
      %v1185 = vmax.f32 %v1167, 0.0
      %v1186 = vld [vmem:[%s9] sm:$0xff]
      %v1187 = vld [vmem:[%s9 + $0x8] sm:$0xff]
      %v1188 = vld [vmem:[%s9 + $0x10] sm:$0xff]
      %v1189 = vld [vmem:[%s9 + $0x18] sm:$0xff]
      %v1190 = vld [vmem:[%s9 + $0x20] sm:$0xff]
      %v1191 = vld [vmem:[%s9 + $0x28] sm:$0xff]
      %v1192 = vld [vmem:[%s9 + $0x30] sm:$0xff]
      %v1193 = vld [vmem:[%s9 + $0x38] sm:$0xff]
      %v1194 = vld [vmem:[%s9 + $0x40] sm:$0xff]
      %v1195 = vld [vmem:[%s9 + $0x48] sm:$0xff]
      %v1196 = vld [vmem:[%s9 + $0x50] sm:$0xff]
      %v1197 = vld [vmem:[%s9 + $0x58] sm:$0xff]
      %v1198 = vld [vmem:[%s9 + $0x60] sm:$0xff]
      %v1199 = vld [vmem:[%s9 + $0x68] sm:$0xff]
      %v1200 = vld [vmem:[%s9 + $0x70] sm:$0xff]
      %v1201 = vld [vmem:[%s9 + $0x78] sm:$0xff]
      %v1202 = vld [vmem:[%s10] sm:$0x3]
      %v1203 = vpack.c.bf16 %v1171, %v1170
      %v1204 = vpack.c.bf16 %v1173, %v1172
      %v1205 = vpack.c.bf16 %v1175, %v1174
      %v1206 = vpack.c.bf16 %v1177, %v1176
      %v1207 = vpack.c.bf16 %v1179, %v1178
      %v1208 = vpack.c.bf16 %v1181, %v1180
      %v1209 = vpack.c.bf16 %v1183, %v1182
      %v1210 = vpack.c.bf16 %v1185, %v1184
      %v1212 = vlaneseq
      %v1213 = vshrl.u32 %v1212, 7
      %v1214 = vsub.s32 0, %v1213
      %v1215 = vrot.slane %v1202, %v1214
      %v1216 = vlaneseq
      %v1217 = vshrl.u32 %v1216, 7
      %v1218 = vsub.s32 1, %v1217
      %v1219 = vrot.slane %v1202, %v1218
      %v1238 = vunpack.c.l.b16 %v1186
      %v1239 = vunpack.c.h.b16 %v1186
      %v1240 = vunpack.c.l.b16 %v1187
      %v1241 = vunpack.c.h.b16 %v1187
      %v1242 = vunpack.c.l.b16 %v1188
      %v1243 = vunpack.c.h.b16 %v1188
      %v1244 = vunpack.c.l.b16 %v1189
      %v1245 = vunpack.c.h.b16 %v1189
      %v1246 = vunpack.c.l.b16 %v1190
      %v1247 = vunpack.c.h.b16 %v1190
      %v1248 = vunpack.c.l.b16 %v1191
      %v1249 = vunpack.c.h.b16 %v1191
      %v1250 = vunpack.c.l.b16 %v1192
      %v1251 = vunpack.c.h.b16 %v1192
      %v1252 = vunpack.c.l.b16 %v1193
      %v1253 = vunpack.c.h.b16 %v1193
      %v1254 = vunpack.c.l.b16 %v1194
      %v1255 = vunpack.c.h.b16 %v1194
      %v1256 = vunpack.c.l.b16 %v1195
      %v1257 = vunpack.c.h.b16 %v1195
      %v1258 = vunpack.c.l.b16 %v1196
      %v1259 = vunpack.c.h.b16 %v1196
      %v1260 = vunpack.c.l.b16 %v1197
      %v1261 = vunpack.c.h.b16 %v1197
      %v1262 = vunpack.c.l.b16 %v1198
      %v1263 = vunpack.c.h.b16 %v1198
      %v1264 = vunpack.c.l.b16 %v1199
      %v1265 = vunpack.c.h.b16 %v1199
      %v1266 = vunpack.c.l.b16 %v1200
      %v1267 = vunpack.c.h.b16 %v1200
      %v1268 = vunpack.c.l.b16 %v1201
      %v1269 = vunpack.c.h.b16 %v1201
      %v1270 = vpack.c.b16 %v1240, %v1238
      %v1271 = vpack.c.b16 %v1241, %v1239
      %v1272 = vpack.c.b16 %v1244, %v1242
      %v1273 = vpack.c.b16 %v1245, %v1243
      %v1274 = vpack.c.b16 %v1248, %v1246
      %v1275 = vpack.c.b16 %v1249, %v1247
      %v1276 = vpack.c.b16 %v1252, %v1250
      %v1277 = vpack.c.b16 %v1253, %v1251
      %v1278 = vpack.c.b16 %v1256, %v1254
      %v1279 = vpack.c.b16 %v1257, %v1255
      %v1280 = vpack.c.b16 %v1260, %v1258
      %v1281 = vpack.c.b16 %v1261, %v1259
      %v1282 = vpack.c.b16 %v1264, %v1262
      %v1283 = vpack.c.b16 %v1265, %v1263
      %v1284 = vpack.c.b16 %v1268, %v1266
      %v1285 = vpack.c.b16 %v1269, %v1267
      %1302 = vmatprep.subr.bf16.mxu0 %v1285
      %1303 = vmatpush1.bf16.msra.mxu0 %v1284
      %1304 = vmatprep.subr.bf16.mxu0 %v1283
      %1305 = vmatpush1.bf16.msra.mxu0 %v1282
      %1306 = vmatprep.subr.bf16.mxu0 %v1281
      %1307 = vmatpush1.bf16.msra.mxu0 %v1280
      %1308 = vmatprep.subr.bf16.mxu0 %v1279
      %1309 = vmatpush1.bf16.msra.mxu0 %v1278
      %1310 = vmatprep.subr.bf16.mxu0 %v1277
      %1311 = vmatpush1.bf16.msra.mxu0 %v1276
      %1312 = vmatprep.subr.bf16.mxu0 %v1275
      %1313 = vmatpush1.bf16.msra.mxu0 %v1274
      %1314 = vmatprep.subr.bf16.mxu0 %v1273
      %1315 = vmatpush1.bf16.msra.mxu0 %v1272
      %1316 = vmatprep.subr.bf16.mxu0 %v1271
      %1317 = vmatpush1.bf16.msra.mxu0 %v1270
      %1318 = vmatprep.subr.bf16.mxu0 0
      %1319 = vmatpush2.bf16.msra.mxu0 0
      %1320 = vmatprep.subr.bf16.mxu0 0
      %1321 = vmatpush2.bf16.msra.mxu0 0
      %1322 = vmatprep.subr.bf16.mxu0 0
      %1323 = vmatpush2.bf16.msra.mxu0 0
      %1324 = vmatprep.subr.bf16.mxu0 0
      %1325 = vmatpush2.bf16.msra.mxu0 0
      %1326 = vmatprep.subr.bf16.mxu0 0
      %1327 = vmatpush2.bf16.msra.mxu0 0
      %1328 = vmatprep.subr.bf16.mxu0 0
      %1329 = vmatpush2.bf16.msra.mxu0 0
      %1330 = vmatprep.subr.bf16.mxu0 0
      %1331 = vmatpush2.bf16.msra.mxu0 0
      %1332 = vmatprep.subr.bf16.mxu0 0
      %1333 = vmatpush2.bf16.msra.mxu0 0
      %1334 = vmatprep.mubr.bf16.mxu0 0
      %1335 = vmatmul.mubr.bf16.gmra.mxu0 %v1203
      %v1336 = vpop.f32.mrf.mxu0
      %v1337 = vadd.f32 %v1215, %v1336
      %v1338 = vpop.f32.mrf.mxu0
      %v1339 = vadd.f32 %v1219, %v1338
      %v1340 = vpop.f32.mrf.mxu0
      %v1341 = vadd.f32 %v1215, %v1340
      %v1342 = vpop.f32.mrf.mxu0
      %v1343 = vadd.f32 %v1219, %v1342
      %1344 = vmatprep.mubr.bf16.mxu0 0
      %1345 = vmatmul.mubr.bf16.gmra.mxu0 %v1204
      %v1346 = vpop.f32.mrf.mxu0
      %v1347 = vadd.f32 %v1215, %v1346
      %v1348 = vpop.f32.mrf.mxu0
      %v1349 = vadd.f32 %v1219, %v1348
      %v1350 = vpop.f32.mrf.mxu0
      %v1351 = vadd.f32 %v1215, %v1350
      %v1352 = vpop.f32.mrf.mxu0
      %v1353 = vadd.f32 %v1219, %v1352
      %1354 = vmatprep.mubr.bf16.mxu0 0
      %1355 = vmatmul.mubr.bf16.gmra.mxu0 %v1205
      %v1356 = vpop.f32.mrf.mxu0
      %v1357 = vadd.f32 %v1215, %v1356
      %v1358 = vpop.f32.mrf.mxu0
      %v1359 = vadd.f32 %v1219, %v1358
      %v1360 = vpop.f32.mrf.mxu0
      %v1361 = vadd.f32 %v1215, %v1360
      %v1362 = vpop.f32.mrf.mxu0
      %v1363 = vadd.f32 %v1219, %v1362
      %1364 = vmatprep.mubr.bf16.mxu0 0
      %1365 = vmatmul.mubr.bf16.gmra.mxu0 %v1206
      %v1366 = vpop.f32.mrf.mxu0
      %v1367 = vadd.f32 %v1215, %v1366
      %v1368 = vpop.f32.mrf.mxu0
      %v1369 = vadd.f32 %v1219, %v1368
      %v1370 = vpop.f32.mrf.mxu0
      %v1371 = vadd.f32 %v1215, %v1370
      %v1372 = vpop.f32.mrf.mxu0
      %v1373 = vadd.f32 %v1219, %v1372
      %1374 = vmatprep.mubr.bf16.mxu0 0
      %1375 = vmatmul.mubr.bf16.gmra.mxu0 %v1207
      %v1376 = vpop.f32.mrf.mxu0
      %v1377 = vadd.f32 %v1215, %v1376
      %v1378 = vpop.f32.mrf.mxu0
      %v1379 = vadd.f32 %v1219, %v1378
      %v1380 = vpop.f32.mrf.mxu0
      %v1381 = vadd.f32 %v1215, %v1380
      %v1382 = vpop.f32.mrf.mxu0
      %v1383 = vadd.f32 %v1219, %v1382
      %1384 = vmatprep.mubr.bf16.mxu0 0
      %1385 = vmatmul.mubr.bf16.gmra.mxu0 %v1208
      %v1386 = vpop.f32.mrf.mxu0
      %v1387 = vadd.f32 %v1215, %v1386
      %v1388 = vpop.f32.mrf.mxu0
      %v1389 = vadd.f32 %v1219, %v1388
      %v1390 = vpop.f32.mrf.mxu0
      %v1391 = vadd.f32 %v1215, %v1390
      %v1392 = vpop.f32.mrf.mxu0
      %v1393 = vadd.f32 %v1219, %v1392
      %1394 = vmatprep.mubr.bf16.mxu0 0
      %1395 = vmatmul.mubr.bf16.gmra.mxu0 %v1209
      %v1396 = vpop.f32.mrf.mxu0
      %v1397 = vadd.f32 %v1215, %v1396
      %v1398 = vpop.f32.mrf.mxu0
      %v1399 = vadd.f32 %v1219, %v1398
      %v1400 = vpop.f32.mrf.mxu0
      %v1401 = vadd.f32 %v1215, %v1400
      %v1402 = vpop.f32.mrf.mxu0
      %v1403 = vadd.f32 %v1219, %v1402
      %1404 = vmatprep.mubr.bf16.mxu0 0
      %1405 = vmatmul.mubr.bf16.gmra.mxu0 %v1210
      %v1406 = vpop.f32.mrf.mxu0
      %v1407 = vadd.f32 %v1215, %v1406
      %v1408 = vpop.f32.mrf.mxu0
      %v1409 = vadd.f32 %v1219, %v1408
      %v1410 = vpop.f32.mrf.mxu0
      %v1411 = vadd.f32 %v1215, %v1410
      %v1412 = vpop.f32.mrf.mxu0
      %v1413 = vadd.f32 %v1219, %v1412
      %1414 = vdwg.mxu0
      %v1415 = vmax.f32 %v1337, 0.0
      %v1416 = vmax.f32 %v1339, 0.0
      %v1417 = vmax.f32 %v1341, 0.0
      %v1418 = vmax.f32 %v1343, 0.0
      %v1419 = vmax.f32 %v1347, 0.0
      %v1420 = vmax.f32 %v1349, 0.0
      %v1421 = vmax.f32 %v1351, 0.0
      %v1422 = vmax.f32 %v1353, 0.0
      %v1423 = vmax.f32 %v1357, 0.0
      %v1424 = vmax.f32 %v1359, 0.0
      %v1425 = vmax.f32 %v1361, 0.0
      %v1426 = vmax.f32 %v1363, 0.0
      %v1427 = vmax.f32 %v1367, 0.0
      %v1428 = vmax.f32 %v1369, 0.0
      %v1429 = vmax.f32 %v1371, 0.0
      %v1430 = vmax.f32 %v1373, 0.0
      %v1431 = vmax.f32 %v1377, 0.0
      %v1432 = vmax.f32 %v1379, 0.0
      %v1433 = vmax.f32 %v1381, 0.0
      %v1434 = vmax.f32 %v1383, 0.0
      %v1435 = vmax.f32 %v1387, 0.0
      %v1436 = vmax.f32 %v1389, 0.0
      %v1437 = vmax.f32 %v1391, 0.0
      %v1438 = vmax.f32 %v1393, 0.0
      %v1439 = vmax.f32 %v1397, 0.0
      %v1440 = vmax.f32 %v1399, 0.0
      %v1441 = vmax.f32 %v1401, 0.0
      %v1442 = vmax.f32 %v1403, 0.0
      %v1443 = vmax.f32 %v1407, 0.0
      %v1444 = vmax.f32 %v1409, 0.0
      %v1445 = vmax.f32 %v1411, 0.0
      %v1446 = vmax.f32 %v1413, 0.0
      %v1447 = vld [vmem:[%s11] sm:$0xf]
      %v1448 = vld [vmem:[%s11 + $0x4] sm:$0xf]
      %v1449 = vld [vmem:[%s11 + $0x8] sm:$0xf]
      %v1450 = vld [vmem:[%s11 + $0xc] sm:$0xf]
      %v1451 = vld [vmem:[%s11 + $0x10] sm:$0xf]
      %v1452 = vld [vmem:[%s11 + $0x14] sm:$0xf]
      %v1453 = vld [vmem:[%s11 + $0x18] sm:$0xf]
      %v1454 = vld [vmem:[%s11 + $0x1c] sm:$0xf]
      %v1455 = vld [vmem:[%s11 + $0x20] sm:$0xf]
      %v1456 = vld [vmem:[%s11 + $0x24] sm:$0xf]
      %v1457 = vld [vmem:[%s11 + $0x28] sm:$0xf]
      %v1458 = vld [vmem:[%s11 + $0x2c] sm:$0xf]
      %v1459 = vld [vmem:[%s11 + $0x30] sm:$0xf]
      %v1460 = vld [vmem:[%s11 + $0x34] sm:$0xf]
      %v1461 = vld [vmem:[%s11 + $0x38] sm:$0xf]
      %v1462 = vld [vmem:[%s11 + $0x3c] sm:$0xf]
      %v1463 = vld [vmem:[%s11 + $0x40] sm:$0xf]
      %v1464 = vld [vmem:[%s11 + $0x44] sm:$0xf]
      %v1465 = vld [vmem:[%s11 + $0x48] sm:$0xf]
      %v1466 = vld [vmem:[%s11 + $0x4c] sm:$0xf]
      %v1467 = vld [vmem:[%s11 + $0x50] sm:$0xf]
      %v1468 = vld [vmem:[%s11 + $0x54] sm:$0xf]
      %v1469 = vld [vmem:[%s11 + $0x58] sm:$0xf]
      %v1470 = vld [vmem:[%s11 + $0x5c] sm:$0xf]
      %v1471 = vld [vmem:[%s11 + $0x60] sm:$0xf]
      %v1472 = vld [vmem:[%s11 + $0x64] sm:$0xf]
      %v1473 = vld [vmem:[%s11 + $0x68] sm:$0xf]
      %v1474 = vld [vmem:[%s11 + $0x6c] sm:$0xf]
      %v1475 = vld [vmem:[%s11 + $0x70] sm:$0xf]
      %v1476 = vld [vmem:[%s11 + $0x74] sm:$0xf]
      %v1477 = vld [vmem:[%s11 + $0x78] sm:$0xf]
      %v1478 = vld [vmem:[%s11 + $0x7c] sm:$0xf]
      %v1479 = vld [vmem:[%s12] sm:$0x1]
      %v1480 = vpack.c.bf16 %v1417, %v1415
      %v1481 = vpack.c.bf16 %v1418, %v1416
      %v1482 = vpack.c.bf16 %v1421, %v1419
      %v1483 = vpack.c.bf16 %v1422, %v1420
      %v1484 = vpack.c.bf16 %v1425, %v1423
      %v1485 = vpack.c.bf16 %v1426, %v1424
      %v1486 = vpack.c.bf16 %v1429, %v1427
      %v1487 = vpack.c.bf16 %v1430, %v1428
      %v1488 = vpack.c.bf16 %v1433, %v1431
      %v1489 = vpack.c.bf16 %v1434, %v1432
      %v1490 = vpack.c.bf16 %v1437, %v1435
      %v1491 = vpack.c.bf16 %v1438, %v1436
      %v1492 = vpack.c.bf16 %v1441, %v1439
      %v1493 = vpack.c.bf16 %v1442, %v1440
      %v1494 = vpack.c.bf16 %v1445, %v1443
      %v1495 = vpack.c.bf16 %v1446, %v1444
      %v1497 = vlaneseq
      %v1498 = vshrl.u32 %v1497, 7
      %v1499 = vsub.s32 0, %v1498
      %v1500 = vrot.slane %v1479, %v1499
      %v1534 = vunpack.c.l.b16 %v1447
      %v1535 = vunpack.c.l.b16 %v1448
      %v1536 = vunpack.c.l.b16 %v1449
      %v1537 = vunpack.c.l.b16 %v1450
      %v1538 = vunpack.c.l.b16 %v1451
      %v1539 = vunpack.c.l.b16 %v1452
      %v1540 = vunpack.c.l.b16 %v1453
      %v1541 = vunpack.c.l.b16 %v1454
      %v1542 = vunpack.c.l.b16 %v1455
      %v1543 = vunpack.c.l.b16 %v1456
      %v1544 = vunpack.c.l.b16 %v1457
      %v1545 = vunpack.c.l.b16 %v1458
      %v1546 = vunpack.c.l.b16 %v1459
      %v1547 = vunpack.c.l.b16 %v1460
      %v1548 = vunpack.c.l.b16 %v1461
      %v1549 = vunpack.c.l.b16 %v1462
      %v1550 = vunpack.c.l.b16 %v1463
      %v1551 = vunpack.c.l.b16 %v1464
      %v1552 = vunpack.c.l.b16 %v1465
      %v1553 = vunpack.c.l.b16 %v1466
      %v1554 = vunpack.c.l.b16 %v1467
      %v1555 = vunpack.c.l.b16 %v1468
      %v1556 = vunpack.c.l.b16 %v1469
      %v1557 = vunpack.c.l.b16 %v1470
      %v1558 = vunpack.c.l.b16 %v1471
      %v1559 = vunpack.c.l.b16 %v1472
      %v1560 = vunpack.c.l.b16 %v1473
      %v1561 = vunpack.c.l.b16 %v1474
      %v1562 = vunpack.c.l.b16 %v1475
      %v1563 = vunpack.c.l.b16 %v1476
      %v1564 = vunpack.c.l.b16 %v1477
      %v1565 = vunpack.c.l.b16 %v1478
      %v1566 = vpack.c.b16 %v1535, %v1534
      %v1567 = vpack.c.b16 %v1537, %v1536
      %v1568 = vpack.c.b16 %v1539, %v1538
      %v1569 = vpack.c.b16 %v1541, %v1540
      %v1570 = vpack.c.b16 %v1543, %v1542
      %v1571 = vpack.c.b16 %v1545, %v1544
      %v1572 = vpack.c.b16 %v1547, %v1546
      %v1573 = vpack.c.b16 %v1549, %v1548
      %v1574 = vpack.c.b16 %v1551, %v1550
      %v1575 = vpack.c.b16 %v1553, %v1552
      %v1576 = vpack.c.b16 %v1555, %v1554
      %v1577 = vpack.c.b16 %v1557, %v1556
      %v1578 = vpack.c.b16 %v1559, %v1558
      %v1579 = vpack.c.b16 %v1561, %v1560
      %v1580 = vpack.c.b16 %v1563, %v1562
      %v1581 = vpack.c.b16 %v1565, %v1564
      %1598 = vmatprep.subr.bf16.mxu0 0
      %1599 = vmatpush1.bf16.msra.mxu0 %v1573
      %1600 = vmatprep.subr.bf16.mxu0 0
      %1601 = vmatpush1.bf16.msra.mxu0 %v1572
      %1602 = vmatprep.subr.bf16.mxu0 0
      %1603 = vmatpush1.bf16.msra.mxu0 %v1571
      %1604 = vmatprep.subr.bf16.mxu0 0
      %1605 = vmatpush1.bf16.msra.mxu0 %v1570
      %1606 = vmatprep.subr.bf16.mxu0 0
      %1607 = vmatpush1.bf16.msra.mxu0 %v1569
      %1608 = vmatprep.subr.bf16.mxu0 0
      %1609 = vmatpush1.bf16.msra.mxu0 %v1568
      %1610 = vmatprep.subr.bf16.mxu0 0
      %1611 = vmatpush1.bf16.msra.mxu0 %v1567
      %1612 = vmatprep.subr.bf16.mxu0 0
      %1613 = vmatpush1.bf16.msra.mxu0 %v1566
      %1614 = vmatprep.subr.bf16.mxu0 0
      %1615 = vmatpush2.bf16.msra.mxu0 %v1581
      %1616 = vmatprep.subr.bf16.mxu0 0
      %1617 = vmatpush2.bf16.msra.mxu0 %v1580
      %1618 = vmatprep.subr.bf16.mxu0 0
      %1619 = vmatpush2.bf16.msra.mxu0 %v1579
      %1620 = vmatprep.subr.bf16.mxu0 0
      %1621 = vmatpush2.bf16.msra.mxu0 %v1578
      %1622 = vmatprep.subr.bf16.mxu0 0
      %1623 = vmatpush2.bf16.msra.mxu0 %v1577
      %1624 = vmatprep.subr.bf16.mxu0 0
      %1625 = vmatpush2.bf16.msra.mxu0 %v1576
      %1626 = vmatprep.subr.bf16.mxu0 0
      %1627 = vmatpush2.bf16.msra.mxu0 %v1575
      %1628 = vmatprep.subr.bf16.mxu0 0
      %1629 = vmatpush2.bf16.msra.mxu0 %v1574
      %1630 = vmatprep.mubr.bf16.mxu0 %v1481
      %1631 = vmatmul.mubr.bf16.gmra.mxu0 %v1480
      %v1632 = vpop.f32.mrf.mxu0
      %v1633 = vadd.f32 %v1500, %v1632
      %v1634 = vpop.f32.mrf.mxu0
      %v1635 = vpop.f32.mrf.mxu0
      %v1636 = vadd.f32 %v1500, %v1635
      %v1637 = vpop.f32.mrf.mxu0
      %1638 = vmatprep.mubr.bf16.mxu0 %v1483
      %1639 = vmatmul.mubr.bf16.gmra.mxu0 %v1482
      %v1640 = vpop.f32.mrf.mxu0
      %v1641 = vadd.f32 %v1500, %v1640
      %v1642 = vpop.f32.mrf.mxu0
      %v1643 = vpop.f32.mrf.mxu0
      %v1644 = vadd.f32 %v1500, %v1643
      %v1645 = vpop.f32.mrf.mxu0
      %1646 = vmatprep.mubr.bf16.mxu0 %v1485
      %1647 = vmatmul.mubr.bf16.gmra.mxu0 %v1484
      %v1648 = vpop.f32.mrf.mxu0
      %v1649 = vadd.f32 %v1500, %v1648
      %v1650 = vpop.f32.mrf.mxu0
      %v1651 = vpop.f32.mrf.mxu0
      %v1652 = vadd.f32 %v1500, %v1651
      %v1653 = vpop.f32.mrf.mxu0
      %1654 = vmatprep.mubr.bf16.mxu0 %v1487
      %1655 = vmatmul.mubr.bf16.gmra.mxu0 %v1486
      %v1656 = vpop.f32.mrf.mxu0
      %v1657 = vadd.f32 %v1500, %v1656
      %v1658 = vpop.f32.mrf.mxu0
      %v1659 = vpop.f32.mrf.mxu0
      %v1660 = vadd.f32 %v1500, %v1659
      %v1661 = vpop.f32.mrf.mxu0
      %1662 = vmatprep.mubr.bf16.mxu0 %v1489
      %1663 = vmatmul.mubr.bf16.gmra.mxu0 %v1488
      %v1664 = vpop.f32.mrf.mxu0
      %v1665 = vadd.f32 %v1500, %v1664
      %v1666 = vpop.f32.mrf.mxu0
      %v1667 = vpop.f32.mrf.mxu0
      %v1668 = vadd.f32 %v1500, %v1667
      %v1669 = vpop.f32.mrf.mxu0
      %1670 = vmatprep.mubr.bf16.mxu0 %v1491
      %1671 = vmatmul.mubr.bf16.gmra.mxu0 %v1490
      %v1672 = vpop.f32.mrf.mxu0
      %v1673 = vadd.f32 %v1500, %v1672
      %v1674 = vpop.f32.mrf.mxu0
      %v1675 = vpop.f32.mrf.mxu0
      %v1676 = vadd.f32 %v1500, %v1675
      %v1677 = vpop.f32.mrf.mxu0
      %1678 = vmatprep.mubr.bf16.mxu0 %v1493
      %1679 = vmatmul.mubr.bf16.gmra.mxu0 %v1492
      %v1680 = vpop.f32.mrf.mxu0
      %v1681 = vadd.f32 %v1500, %v1680
      %v1682 = vpop.f32.mrf.mxu0
      %v1683 = vpop.f32.mrf.mxu0
      %v1684 = vadd.f32 %v1500, %v1683
      %v1685 = vpop.f32.mrf.mxu0
      %1686 = vmatprep.mubr.bf16.mxu0 %v1495
      %1687 = vmatmul.mubr.bf16.gmra.mxu0 %v1494
      %v1688 = vpop.f32.mrf.mxu0
      %v1689 = vadd.f32 %v1500, %v1688
      %v1690 = vpop.f32.mrf.mxu0
      %v1691 = vpop.f32.mrf.mxu0
      %v1692 = vadd.f32 %v1500, %v1691
      %v1693 = vpop.f32.mrf.mxu0
      %1694 = vdwg.mxu0
      %v1695 = vmax.f32 %v1633, 0.0
      %v1696 = vmax.f32 %v1636, 0.0
      %v1697 = vmax.f32 %v1641, 0.0
      %v1698 = vmax.f32 %v1644, 0.0
      %v1699 = vmax.f32 %v1649, 0.0
      %v1700 = vmax.f32 %v1652, 0.0
      %v1701 = vmax.f32 %v1657, 0.0
      %v1702 = vmax.f32 %v1660, 0.0
      %v1703 = vmax.f32 %v1665, 0.0
      %v1704 = vmax.f32 %v1668, 0.0
      %v1705 = vmax.f32 %v1673, 0.0
      %v1706 = vmax.f32 %v1676, 0.0
      %v1707 = vmax.f32 %v1681, 0.0
      %v1708 = vmax.f32 %v1684, 0.0
      %v1709 = vmax.f32 %v1689, 0.0
      %v1710 = vmax.f32 %v1692, 0.0
      %v1711 = vld [vmem:[%s13] sm:$0xf]
      %v1712 = vld [vmem:[%s13 + $0x4] sm:$0xf]
      %v1713 = vld [vmem:[%s13 + $0x8] sm:$0xf]
      %v1714 = vld [vmem:[%s13 + $0xc] sm:$0xf]
      %v1715 = vld [vmem:[%s13 + $0x10] sm:$0xf]
      %v1716 = vld [vmem:[%s13 + $0x14] sm:$0xf]
      %v1717 = vld [vmem:[%s13 + $0x18] sm:$0xf]
      %v1718 = vld [vmem:[%s13 + $0x1c] sm:$0xf]
      %v1719 = vld [vmem:[%s13 + $0x20] sm:$0xf]
      %v1720 = vld [vmem:[%s13 + $0x24] sm:$0xf]
      %v1721 = vld [vmem:[%s13 + $0x28] sm:$0xf]
      %v1722 = vld [vmem:[%s13 + $0x2c] sm:$0xf]
      %v1723 = vld [vmem:[%s13 + $0x30] sm:$0xf]
      %v1724 = vld [vmem:[%s13 + $0x34] sm:$0xf]
      %v1725 = vld [vmem:[%s13 + $0x38] sm:$0xf]
      %v1726 = vld [vmem:[%s13 + $0x3c] sm:$0xf]
      %v1727 = vld [vmem:[%s14] sm:$0x1]
      %v1728 = vpack.c.bf16 %v1696, %v1695
      %v1729 = vpack.c.bf16 %v1698, %v1697
      %v1730 = vpack.c.bf16 %v1700, %v1699
      %v1731 = vpack.c.bf16 %v1702, %v1701
      %v1732 = vpack.c.bf16 %v1704, %v1703
      %v1733 = vpack.c.bf16 %v1706, %v1705
      %v1734 = vpack.c.bf16 %v1708, %v1707
      %v1735 = vpack.c.bf16 %v1710, %v1709
      %v1737 = vlaneseq
      %v1738 = vshrl.u32 %v1737, 7
      %v1739 = vsub.s32 0, %v1738
      %v1740 = vrot.slane %v1727, %v1739
      %v1758 = vunpack.c.l.b16 %v1711
      %v1759 = vunpack.c.l.b16 %v1712
      %v1760 = vunpack.c.l.b16 %v1713
      %v1761 = vunpack.c.l.b16 %v1714
      %v1762 = vunpack.c.l.b16 %v1715
      %v1763 = vunpack.c.l.b16 %v1716
      %v1764 = vunpack.c.l.b16 %v1717
      %v1765 = vunpack.c.l.b16 %v1718
      %v1766 = vunpack.c.l.b16 %v1719
      %v1767 = vunpack.c.l.b16 %v1720
      %v1768 = vunpack.c.l.b16 %v1721
      %v1769 = vunpack.c.l.b16 %v1722
      %v1770 = vunpack.c.l.b16 %v1723
      %v1771 = vunpack.c.l.b16 %v1724
      %v1772 = vunpack.c.l.b16 %v1725
      %v1773 = vunpack.c.l.b16 %v1726
      %v1774 = vpack.c.b16 %v1759, %v1758
      %v1775 = vpack.c.b16 %v1761, %v1760
      %v1776 = vpack.c.b16 %v1763, %v1762
      %v1777 = vpack.c.b16 %v1765, %v1764
      %v1778 = vpack.c.b16 %v1767, %v1766
      %v1779 = vpack.c.b16 %v1769, %v1768
      %v1780 = vpack.c.b16 %v1771, %v1770
      %v1781 = vpack.c.b16 %v1773, %v1772
      %1790 = vmatprep.subr.bf16.mxu0 0
      %1791 = vmatpush1.bf16.msra.mxu0 %v1781
      %1792 = vmatprep.subr.bf16.mxu0 0
      %1793 = vmatpush1.bf16.msra.mxu0 %v1780
      %1794 = vmatprep.subr.bf16.mxu0 0
      %1795 = vmatpush1.bf16.msra.mxu0 %v1779
      %1796 = vmatprep.subr.bf16.mxu0 0
      %1797 = vmatpush1.bf16.msra.mxu0 %v1778
      %1798 = vmatprep.subr.bf16.mxu0 0
      %1799 = vmatpush1.bf16.msra.mxu0 %v1777
      %1800 = vmatprep.subr.bf16.mxu0 0
      %1801 = vmatpush1.bf16.msra.mxu0 %v1776
      %1802 = vmatprep.subr.bf16.mxu0 0
      %1803 = vmatpush1.bf16.msra.mxu0 %v1775
      %1804 = vmatprep.subr.bf16.mxu0 0
      %1805 = vmatpush1.bf16.msra.mxu0 %v1774
      %1806 = vmatprep.subr.bf16.mxu0 0
      %1807 = vmatpush2.bf16.msra.mxu0 0
      %1808 = vmatprep.subr.bf16.mxu0 0
      %1809 = vmatpush2.bf16.msra.mxu0 0
      %1810 = vmatprep.subr.bf16.mxu0 0
      %1811 = vmatpush2.bf16.msra.mxu0 0
      %1812 = vmatprep.subr.bf16.mxu0 0
      %1813 = vmatpush2.bf16.msra.mxu0 0
      %1814 = vmatprep.subr.bf16.mxu0 0
      %1815 = vmatpush2.bf16.msra.mxu0 0
      %1816 = vmatprep.subr.bf16.mxu0 0
      %1817 = vmatpush2.bf16.msra.mxu0 0
      %1818 = vmatprep.subr.bf16.mxu0 0
      %1819 = vmatpush2.bf16.msra.mxu0 0
      %1820 = vmatprep.subr.bf16.mxu0 0
      %1821 = vmatpush2.bf16.msra.mxu0 0
      %1822 = vmatprep.mubr.bf16.mxu0 0
      %1823 = vmatmul.mubr.bf16.gmra.mxu0 %v1728
      %v1824 = vpop.f32.mrf.mxu0
      %v1825 = vadd.f32 %v1740, %v1824
      %v1826 = vpop.f32.mrf.mxu0
      %v1827 = vpop.f32.mrf.mxu0
      %v1828 = vadd.f32 %v1740, %v1827
      %v1829 = vpop.f32.mrf.mxu0
      %1830 = vmatprep.mubr.bf16.mxu0 0
      %1831 = vmatmul.mubr.bf16.gmra.mxu0 %v1729
      %v1832 = vpop.f32.mrf.mxu0
      %v1833 = vadd.f32 %v1740, %v1832
      %v1834 = vpop.f32.mrf.mxu0
      %v1835 = vpop.f32.mrf.mxu0
      %v1836 = vadd.f32 %v1740, %v1835
      %v1837 = vpop.f32.mrf.mxu0
      %1838 = vmatprep.mubr.bf16.mxu0 0
      %1839 = vmatmul.mubr.bf16.gmra.mxu0 %v1730
      %v1840 = vpop.f32.mrf.mxu0
      %v1841 = vadd.f32 %v1740, %v1840
      %v1842 = vpop.f32.mrf.mxu0
      %v1843 = vpop.f32.mrf.mxu0
      %v1844 = vadd.f32 %v1740, %v1843
      %v1845 = vpop.f32.mrf.mxu0
      %1846 = vmatprep.mubr.bf16.mxu0 0
      %1847 = vmatmul.mubr.bf16.gmra.mxu0 %v1731
      %v1848 = vpop.f32.mrf.mxu0
      %v1849 = vadd.f32 %v1740, %v1848
      %v1850 = vpop.f32.mrf.mxu0
      %v1851 = vpop.f32.mrf.mxu0
      %v1852 = vadd.f32 %v1740, %v1851
      %v1853 = vpop.f32.mrf.mxu0
      %1854 = vmatprep.mubr.bf16.mxu0 0
      %1855 = vmatmul.mubr.bf16.gmra.mxu0 %v1732
      %v1856 = vpop.f32.mrf.mxu0
      %v1857 = vadd.f32 %v1740, %v1856
      %v1858 = vpop.f32.mrf.mxu0
      %v1859 = vpop.f32.mrf.mxu0
      %v1860 = vadd.f32 %v1740, %v1859
      %v1861 = vpop.f32.mrf.mxu0
      %1862 = vmatprep.mubr.bf16.mxu0 0
      %1863 = vmatmul.mubr.bf16.gmra.mxu0 %v1733
      %v1864 = vpop.f32.mrf.mxu0
      %v1865 = vadd.f32 %v1740, %v1864
      %v1866 = vpop.f32.mrf.mxu0
      %v1867 = vpop.f32.mrf.mxu0
      %v1868 = vadd.f32 %v1740, %v1867
      %v1869 = vpop.f32.mrf.mxu0
      %1870 = vmatprep.mubr.bf16.mxu0 0
      %1871 = vmatmul.mubr.bf16.gmra.mxu0 %v1734
      %v1872 = vpop.f32.mrf.mxu0
      %v1873 = vadd.f32 %v1740, %v1872
      %v1874 = vpop.f32.mrf.mxu0
      %v1875 = vpop.f32.mrf.mxu0
      %v1876 = vadd.f32 %v1740, %v1875
      %v1877 = vpop.f32.mrf.mxu0
      %1878 = vmatprep.mubr.bf16.mxu0 0
      %1879 = vmatmul.mubr.bf16.gmra.mxu0 %v1735
      %v1880 = vpop.f32.mrf.mxu0
      %v1881 = vadd.f32 %v1740, %v1880
      %v1882 = vpop.f32.mrf.mxu0
      %v1883 = vpop.f32.mrf.mxu0
      %v1884 = vadd.f32 %v1740, %v1883
      %v1885 = vpop.f32.mrf.mxu0
      %1886 = vdwg.mxu0
      %v1887 = vmax.f32 %v1825, 0.0
      %v1888 = vmax.f32 %v1828, 0.0
      %v1889 = vmax.f32 %v1833, 0.0
      %v1890 = vmax.f32 %v1836, 0.0
      %v1891 = vmax.f32 %v1841, 0.0
      %v1892 = vmax.f32 %v1844, 0.0
      %v1893 = vmax.f32 %v1849, 0.0
      %v1894 = vmax.f32 %v1852, 0.0
      %v1895 = vmax.f32 %v1857, 0.0
      %v1896 = vmax.f32 %v1860, 0.0
      %v1897 = vmax.f32 %v1865, 0.0
      %v1898 = vmax.f32 %v1868, 0.0
      %v1899 = vmax.f32 %v1873, 0.0
      %v1900 = vmax.f32 %v1876, 0.0
      %v1901 = vmax.f32 %v1881, 0.0
      %v1902 = vmax.f32 %v1884, 0.0
      %v1903 = vld [vmem:[%s15] sm:$0xf]
      %v1904 = vld [vmem:[%s15 + $0x4] sm:$0xf]
      %v1905 = vld [vmem:[%s15 + $0x8] sm:$0xf]
      %v1906 = vld [vmem:[%s15 + $0xc] sm:$0xf]
      %v1907 = vld [vmem:[%s15 + $0x10] sm:$0xf]
      %v1908 = vld [vmem:[%s15 + $0x14] sm:$0xf]
      %v1909 = vld [vmem:[%s15 + $0x18] sm:$0xf]
      %v1910 = vld [vmem:[%s15 + $0x1c] sm:$0xf]
      %v1911 = vld [vmem:[%s16] sm:$0x1]
      %v1912 = vpack.c.bf16 %v1888, %v1887
      %v1913 = vpack.c.bf16 %v1890, %v1889
      %v1914 = vpack.c.bf16 %v1892, %v1891
      %v1915 = vpack.c.bf16 %v1894, %v1893
      %v1916 = vpack.c.bf16 %v1896, %v1895
      %v1917 = vpack.c.bf16 %v1898, %v1897
      %v1918 = vpack.c.bf16 %v1900, %v1899
      %v1919 = vpack.c.bf16 %v1902, %v1901
      %v1921 = vlaneseq
      %v1922 = vshrl.u32 %v1921, 7
      %v1923 = vsub.s32 0, %v1922
      %v1924 = vrot.slane %v1911, %v1923
      %v1934 = vunpack.c.l.b16 %v1903
      %v1935 = vunpack.c.l.b16 %v1904
      %v1936 = vunpack.c.l.b16 %v1905
      %v1937 = vunpack.c.l.b16 %v1906
      %v1938 = vunpack.c.l.b16 %v1907
      %v1939 = vunpack.c.l.b16 %v1908
      %v1940 = vunpack.c.l.b16 %v1909
      %v1941 = vunpack.c.l.b16 %v1910
      %v1942 = vpack.c.b16 %v1935, %v1934
      %v1943 = vpack.c.b16 %v1937, %v1936
      %v1944 = vpack.c.b16 %v1939, %v1938
      %v1945 = vpack.c.b16 %v1941, %v1940
      %v1951 = vsel %vm1048, %v1912, 0
      %v1954 = vsel %vm1048, %v1913, 0
      %v1957 = vsel %vm1048, %v1914, 0
      %v1960 = vsel %vm1048, %v1915, 0
      %v1963 = vsel %vm1048, %v1916, 0
      %v1966 = vsel %vm1048, %v1917, 0
      %v1969 = vsel %vm1048, %v1918, 0
      %v1972 = vsel %vm1048, %v1919, 0
      %1974 = vmatprep.subr.bf16.mxu0 0
      %1975 = vmatpush1.bf16.msra.mxu0 0
      %1976 = vmatprep.subr.bf16.mxu0 0
      %1977 = vmatpush1.bf16.msra.mxu0 0
      %1978 = vmatprep.subr.bf16.mxu0 0
      %1979 = vmatpush1.bf16.msra.mxu0 0
      %1980 = vmatprep.subr.bf16.mxu0 0
      %1981 = vmatpush1.bf16.msra.mxu0 0
      %1982 = vmatprep.subr.bf16.mxu0 0
      %1983 = vmatpush1.bf16.msra.mxu0 %v1945
      %1984 = vmatprep.subr.bf16.mxu0 0
      %1985 = vmatpush1.bf16.msra.mxu0 %v1944
      %1986 = vmatprep.subr.bf16.mxu0 0
      %1987 = vmatpush1.bf16.msra.mxu0 %v1943
      %1988 = vmatprep.subr.bf16.mxu0 0
      %1989 = vmatpush1.bf16.msra.mxu0 %v1942
      %1990 = vmatprep.subr.bf16.mxu0 0
      %1991 = vmatpush2.bf16.msra.mxu0 0
      %1992 = vmatprep.subr.bf16.mxu0 0
      %1993 = vmatpush2.bf16.msra.mxu0 0
      %1994 = vmatprep.subr.bf16.mxu0 0
      %1995 = vmatpush2.bf16.msra.mxu0 0
      %1996 = vmatprep.subr.bf16.mxu0 0
      %1997 = vmatpush2.bf16.msra.mxu0 0
      %1998 = vmatprep.subr.bf16.mxu0 0
      %1999 = vmatpush2.bf16.msra.mxu0 0
      %2000 = vmatprep.subr.bf16.mxu0 0
      %2001 = vmatpush2.bf16.msra.mxu0 0
      %2002 = vmatprep.subr.bf16.mxu0 0
      %2003 = vmatpush2.bf16.msra.mxu0 0
      %2004 = vmatprep.subr.bf16.mxu0 0
      %2005 = vmatpush2.bf16.msra.mxu0 0
      %2006 = vmatprep.mubr.bf16.mxu0 0
      %2007 = vmatmul.mubr.bf16.gmra.mxu0 %v1951
      %v2008 = vpop.f32.mrf.mxu0
      %v2009 = vadd.f32 %v1924, %v2008
      %v2010 = vpop.f32.mrf.mxu0
      %v2011 = vpop.f32.mrf.mxu0
      %v2012 = vadd.f32 %v1924, %v2011
      %v2013 = vpop.f32.mrf.mxu0
      %2014 = vmatprep.mubr.bf16.mxu0 0
      %2015 = vmatmul.mubr.bf16.gmra.mxu0 %v1954
      %v2016 = vpop.f32.mrf.mxu0
      %v2017 = vadd.f32 %v1924, %v2016
      %v2018 = vpop.f32.mrf.mxu0
      %v2019 = vpop.f32.mrf.mxu0
      %v2020 = vadd.f32 %v1924, %v2019
      %v2021 = vpop.f32.mrf.mxu0
      %2022 = vmatprep.mubr.bf16.mxu0 0
      %2023 = vmatmul.mubr.bf16.gmra.mxu0 %v1957
      %v2024 = vpop.f32.mrf.mxu0
      %v2025 = vadd.f32 %v1924, %v2024
      %v2026 = vpop.f32.mrf.mxu0
      %v2027 = vpop.f32.mrf.mxu0
      %v2028 = vadd.f32 %v1924, %v2027
      %v2029 = vpop.f32.mrf.mxu0
      %2030 = vmatprep.mubr.bf16.mxu0 0
      %2031 = vmatmul.mubr.bf16.gmra.mxu0 %v1960
      %v2032 = vpop.f32.mrf.mxu0
      %v2033 = vadd.f32 %v1924, %v2032
      %v2034 = vpop.f32.mrf.mxu0
      %v2035 = vpop.f32.mrf.mxu0
      %v2036 = vadd.f32 %v1924, %v2035
      %v2037 = vpop.f32.mrf.mxu0
      %2038 = vmatprep.mubr.bf16.mxu0 0
      %2039 = vmatmul.mubr.bf16.gmra.mxu0 %v1963
      %v2040 = vpop.f32.mrf.mxu0
      %v2041 = vadd.f32 %v1924, %v2040
      %v2042 = vpop.f32.mrf.mxu0
      %v2043 = vpop.f32.mrf.mxu0
      %v2044 = vadd.f32 %v1924, %v2043
      %v2045 = vpop.f32.mrf.mxu0
      %2046 = vmatprep.mubr.bf16.mxu0 0
      %2047 = vmatmul.mubr.bf16.gmra.mxu0 %v1966
      %v2048 = vpop.f32.mrf.mxu0
      %v2049 = vadd.f32 %v1924, %v2048
      %v2050 = vpop.f32.mrf.mxu0
      %v2051 = vpop.f32.mrf.mxu0
      %v2052 = vadd.f32 %v1924, %v2051
      %v2053 = vpop.f32.mrf.mxu0
      %2054 = vmatprep.mubr.bf16.mxu0 0
      %2055 = vmatmul.mubr.bf16.gmra.mxu0 %v1969
      %v2056 = vpop.f32.mrf.mxu0
      %v2057 = vadd.f32 %v1924, %v2056
      %v2058 = vpop.f32.mrf.mxu0
      %v2059 = vpop.f32.mrf.mxu0
      %v2060 = vadd.f32 %v1924, %v2059
      %v2061 = vpop.f32.mrf.mxu0
      %2062 = vmatprep.mubr.bf16.mxu0 0
      %2063 = vmatmul.mubr.bf16.gmra.mxu0 %v1972
      %v2064 = vpop.f32.mrf.mxu0
      %v2065 = vadd.f32 %v1924, %v2064
      %v2066 = vpop.f32.mrf.mxu0
      %v2067 = vpop.f32.mrf.mxu0
      %v2068 = vadd.f32 %v1924, %v2067
      %v2069 = vpop.f32.mrf.mxu0
      %2070 = vdwg.mxu0
      %v2071 = vmax.f32 %v2009, 0.0
      %v2072 = vmax.f32 %v2012, 0.0
      %v2073 = vmax.f32 %v2017, 0.0
      %v2074 = vmax.f32 %v2020, 0.0
      %v2075 = vmax.f32 %v2025, 0.0
      %v2076 = vmax.f32 %v2028, 0.0
      %v2077 = vmax.f32 %v2033, 0.0
      %v2078 = vmax.f32 %v2036, 0.0
      %v2079 = vmax.f32 %v2041, 0.0
      %v2080 = vmax.f32 %v2044, 0.0
      %v2081 = vmax.f32 %v2049, 0.0
      %v2082 = vmax.f32 %v2052, 0.0
      %v2083 = vmax.f32 %v2057, 0.0
      %v2084 = vmax.f32 %v2060, 0.0
      %v2085 = vmax.f32 %v2065, 0.0
      %v2086 = vmax.f32 %v2068, 0.0
      %v2087 = vld [vmem:[%s17] sm:$0x1]
      %v2088 = vld [vmem:[#allocation2] sm:$0x1]
      %v2090 = vlaneseq
      %v2091 = vshrl.u32 %v2090, 7
      %v2092 = vsub.s32 0, %v2091
      %v2093 = vrot.slane %v2087, %v2092
      %v2095 = vmul.f32 %v2071, %v2093
      %v2096 = vmul.f32 %v2072, %v2093
      %v2097 = vmul.f32 %v2073, %v2093
      %v2098 = vmul.f32 %v2074, %v2093
      %v2099 = vmul.f32 %v2075, %v2093
      %v2100 = vmul.f32 %v2076, %v2093
      %v2101 = vmul.f32 %v2077, %v2093
      %v2102 = vmul.f32 %v2078, %v2093
      %v2103 = vmul.f32 %v2079, %v2093
      %v2104 = vmul.f32 %v2080, %v2093
      %v2105 = vmul.f32 %v2081, %v2093
      %v2106 = vmul.f32 %v2082, %v2093
      %v2107 = vmul.f32 %v2083, %v2093
      %v2108 = vmul.f32 %v2084, %v2093
      %v2109 = vmul.f32 %v2085, %v2093
      %v2110 = vmul.f32 %v2086, %v2093
      %v2111 = vsel %vm863, %v2095, 0.0
      %2112 = vadd.xlane.f32.xlu0 %v2111
      %v2113 = vpop.xlane.xlu0 %2112
      %v2114 = vsel %vm863, %v2096, 0.0
      %2115 = vadd.xlane.f32.xlu0 %v2114
      %v2116 = vpop.xlane.xlu0 %2115
      %v2117 = vsel %vm863, %v2097, 0.0
      %2118 = vadd.xlane.f32.xlu0 %v2117
      %v2119 = vpop.xlane.xlu0 %2118
      %v2120 = vsel %vm863, %v2098, 0.0
      %2121 = vadd.xlane.f32.xlu0 %v2120
      %v2122 = vpop.xlane.xlu0 %2121
      %v2123 = vsel %vm863, %v2099, 0.0
      %2124 = vadd.xlane.f32.xlu0 %v2123
      %v2125 = vpop.xlane.xlu0 %2124
      %v2126 = vsel %vm863, %v2100, 0.0
      %2127 = vadd.xlane.f32.xlu0 %v2126
      %v2128 = vpop.xlane.xlu0 %2127
      %v2129 = vsel %vm863, %v2101, 0.0
      %2130 = vadd.xlane.f32.xlu0 %v2129
      %v2131 = vpop.xlane.xlu0 %2130
      %v2132 = vsel %vm863, %v2102, 0.0
      %2133 = vadd.xlane.f32.xlu0 %v2132
      %v2134 = vpop.xlane.xlu0 %2133
      %v2135 = vsel %vm863, %v2103, 0.0
      %2136 = vadd.xlane.f32.xlu0 %v2135
      %v2137 = vpop.xlane.xlu0 %2136
      %v2138 = vsel %vm863, %v2104, 0.0
      %2139 = vadd.xlane.f32.xlu0 %v2138
      %v2140 = vpop.xlane.xlu0 %2139
      %v2141 = vsel %vm863, %v2105, 0.0
      %2142 = vadd.xlane.f32.xlu0 %v2141
      %v2143 = vpop.xlane.xlu0 %2142
      %v2144 = vsel %vm863, %v2106, 0.0
      %2145 = vadd.xlane.f32.xlu0 %v2144
      %v2146 = vpop.xlane.xlu0 %2145
      %v2147 = vsel %vm863, %v2107, 0.0
      %2148 = vadd.xlane.f32.xlu0 %v2147
      %v2149 = vpop.xlane.xlu0 %2148
      %v2150 = vsel %vm863, %v2108, 0.0
      %2151 = vadd.xlane.f32.xlu0 %v2150
      %v2152 = vpop.xlane.xlu0 %2151
      %v2153 = vsel %vm863, %v2109, 0.0
      %2154 = vadd.xlane.f32.xlu0 %v2153
      %v2155 = vpop.xlane.xlu0 %2154
      %v2156 = vsel %vm863, %v2110, 0.0
      %2157 = vadd.xlane.f32.xlu0 %v2156
      %v2158 = vpop.xlane.xlu0 %2157
      %v2160 = vlaneseq
      %v2161 = vshrl.u32 %v2160, 7
      %v2162 = vsub.s32 0, %v2161
      %v2163 = vrot.slane %v2088, %v2162
      %v2165 = vadd.f32 %v2113, %v2163
      %v2166 = vadd.f32 %v2116, %v2163
      %v2167 = vadd.f32 %v2119, %v2163
      %v2168 = vadd.f32 %v2122, %v2163
      %v2169 = vadd.f32 %v2125, %v2163
      %v2170 = vadd.f32 %v2128, %v2163
      %v2171 = vadd.f32 %v2131, %v2163
      %v2172 = vadd.f32 %v2134, %v2163
      %v2173 = vadd.f32 %v2137, %v2163
      %v2174 = vadd.f32 %v2140, %v2163
      %v2175 = vadd.f32 %v2143, %v2163
      %v2176 = vadd.f32 %v2146, %v2163
      %v2177 = vadd.f32 %v2149, %v2163
      %v2178 = vadd.f32 %v2152, %v2163
      %v2179 = vadd.f32 %v2155, %v2163
      %v2180 = vadd.f32 %v2158, %v2163
      %vm2181 = vcmask 7168
      %2182 = vst.msk [vmem:[%s606] sm:$0xff] %vm2181, %v2165
      %2183 = vst.msk [vmem:[%s606 + $0x8] sm:$0xff] %vm2181, %v2166
      %2184 = vst.msk [vmem:[%s606 + $0x10] sm:$0xff] %vm2181, %v2167
      %2185 = vst.msk [vmem:[%s606 + $0x18] sm:$0xff] %vm2181, %v2168
      %2186 = vst.msk [vmem:[%s606 + $0x20] sm:$0xff] %vm2181, %v2169
      %2187 = vst.msk [vmem:[%s606 + $0x28] sm:$0xff] %vm2181, %v2170
      %2188 = vst.msk [vmem:[%s606 + $0x30] sm:$0xff] %vm2181, %v2171
      %2189 = vst.msk [vmem:[%s606 + $0x38] sm:$0xff] %vm2181, %v2172
      %2190 = vst.msk [vmem:[%s606 + $0x40] sm:$0xff] %vm2181, %v2173
      %2191 = vst.msk [vmem:[%s606 + $0x48] sm:$0xff] %vm2181, %v2174
      %2192 = vst.msk [vmem:[%s606 + $0x50] sm:$0xff] %vm2181, %v2175
      %2193 = vst.msk [vmem:[%s606 + $0x58] sm:$0xff] %vm2181, %v2176
      %2194 = vst.msk [vmem:[%s606 + $0x60] sm:$0xff] %vm2181, %v2177
      %2195 = vst.msk [vmem:[%s606 + $0x68] sm:$0xff] %vm2181, %v2178
      %2196 = vst.msk [vmem:[%s606 + $0x70] sm:$0xff] %vm2181, %v2179
      %2197 = vst.msk [vmem:[%s606 + $0x78] sm:$0xff] %vm2181, %v2180
      %s2198 = smul.u32 16, %s32
      %p2199 = scmp.lt.s32.totalorder %s2198, 31
      %s2200 = scalar_select %p2199, %s2198, 31
      %s2201 = smul.addr %s2200, 8
      %s2202 = scalar_lea.vmem %s19, %s2201
      // Predicated region
      $region97: #{tpu_custom_call.1} parent=95 // pred_check
        %p2203 = pneg %p454
      $region98: #{tpu_custom_call.1} parent=95 // pred_check_branch
        %2205 = sbr.rel (%p2203) target = $region100
      $region99: #{tpu_custom_call.1} parent=95 // pred_region
        %s2206 = smul.u32 16, %s32
      $region100: #{tpu_custom_call.1} parent=95 // pred_fallthru
        _
    $region96: #{tpu_custom_call.1} parent=5 // pred_fallthru
      _
    %p2207 = scmp.le.s32.totalorder 2, %s27
    // Predicated region
    $region101: #{tpu_custom_call.1} parent=5 // pred_check
      %p2208 = pneg %p2207
    $region102: #{tpu_custom_call.1} parent=5 // pred_check_branch
      %2210 = sbr.rel (%p2208) target = $region104
    $region103: #{tpu_custom_call.1} parent=5 // pred_region
      %s2211 = ssub.s32 %s27, 2
      // Predicated region
      $region105: #{tpu_custom_call.1} parent=103 // pred_check
        %p2212 = pneg %p460
      $region106: #{tpu_custom_call.1} parent=103 // pred_check_branch
        %2214 = sbr.rel (%p2212) target = $region108
      $region107: #{tpu_custom_call.1} parent=103 // pred_region
        %s2215 = smul.u32 16, %s33
        %p2216 = scmp.lt.s32.totalorder %s2215, 31
        %s2217 = scalar_select %p2216, %s2215, 31
        %s2218 = smul.addr %s2217, 8
        %s2219 = scalar_lea.vmem %s19, %s2218
      $region108: #{tpu_custom_call.1} parent=103 // pred_fallthru
        _
    $region104: #{tpu_custom_call.1} parent=5 // pred_fallthru
      _
  $region6: #{tpu_custom_call.1} parent=0 // loop_footer
    %s31 = sadd.s32 1, %s27
  $region7: #{tpu_custom_call.1} parent=0 // loop_footer_branch
    %26 = sbr.rel target = $region3
  $region8: #{tpu_custom_call.1} parent=0 // loop_exit
    _

</llo_original>
